<compile_context>
chip_gen: v7x
topology: tpu7x:2x2x1
jax: 0.10.0
libtpu: 0.0.40
codegen_flags: <defaults>
</compile_context>

<pallas_src>
import jax
import jax.numpy as jnp
from jax import lax
from jax.experimental import pallas as pl
from jax.experimental.pallas import tpu as pltpu


def _dw3x3_bn_leaky_kernel(x_ref, w_ref, b_ref, out_ref, pad_ref):
    # x_ref:   (1, gc, H, W)        VMEM, native dtype; gc input channels per step
    # w_ref:   (Cout*9,)            SMEM f32; BN scale folded into taps, t = kh*3+kw
    # b_ref:   (Cout,)              SMEM f32; folded BN bias = beta - mean*scale
    # out_ref: (1, gc*mult, H, W)   VMEM
    # pad_ref: (H+2, W+2)           VMEM f32 scratch (zero halo for padding=1)
    cblk = pl.program_id(1)
    gc = x_ref.shape[1]
    mult = out_ref.shape[1] // gc
    H, W = x_ref.shape[2], x_ref.shape[3]

    # Zero the halo scratch once per grid step; the interior is fully overwritten
    # for every input channel below, only the 1-px border must stay zero.
    pad_ref[...] = jnp.zeros_like(pad_ref)

    for g in range(gc):                                     # static unroll
        c = cblk * gc + g                                   # absolute input channel
        pad_ref[pl.ds(1, H), pl.ds(1, W)] = x_ref[0, g, :, :].astype(jnp.float32)
        xp = pad_ref[...]
        for m in range(mult):                               # static unroll
            o = c * mult + m                                # absolute output channel
            acc = jnp.zeros((H, W), dtype=jnp.float32)
            for kh in range(3):
                for kw in range(3):
                    # scalar (SMEM) * statically shifted plane view: VPU MACs only
                    acc = acc + xp[kh:kh + H, kw:kw + W] * w_ref[o * 9 + kh * 3 + kw]
            y = acc + b_ref[o]
            y = jnp.maximum(y, 0.01 * y)                    # LeakyReLU, slope 0.01
            out_ref[0, g * mult + m, :, :] = y.astype(out_ref.dtype)


def _pick_channel_group(N, Cin, mult, H, W, in_bytes, out_bytes):
    """Largest divisor of Cin whose per-step in/out blocks stay small (they get
    double-buffered), while keeping enough grid steps to feed both v7x TCs."""
    budget = 2 << 20
    feasible = [d for d in range(1, Cin + 1)
                if Cin % d == 0
                and d * H * W * (in_bytes + mult * out_bytes) <= budget]
    if not feasible:
        return 1
    target_steps = min(4, N * Cin)
    good = [d for d in feasible if N * (Cin // d) >= target_steps]
    return max(good) if good else max(feasible)


def depth_wise_forward(x_nchw, weight, gamma, beta, running_mean, running_var,
                       eps=1e-5):
    """x_nchw: (N, Cin, H, W); weight: (Cout, 1, 3, 3) (PyTorch grouped layout,
    groups = Cin). Returns (N, Cout, H, W) in x's dtype."""
    N, Cin, H, W = x_nchw.shape
    Cout = weight.shape[0]
    assert Cout % Cin == 0, "groups=in_planes requires out_planes % in_planes == 0"
    mult = Cout // Cin          # channel multiplier; output o reads input o // mult
    # TODO(synk): stride > 1 path not implemented (module default stride=1).
    # TODO(synk): add H-tiling with a 2-row halo for very large frames so per-step
    #             blocks stay within v7x's 64 MiB VMEM; current blocks are per-plane.

    out_dtype = x_nchw.dtype
    in_bytes = jnp.dtype(x_nchw.dtype).itemsize
    out_bytes = jnp.dtype(out_dtype).itemsize

    # Fold BN (inference) into per-channel scale/bias, then fold the scale into the
    # conv taps (conv is linear).  Flatten taps to 1-D for compact SMEM residency.
    scale = (gamma.astype(jnp.float32) /
             jnp.sqrt(running_var.astype(jnp.float32) + eps))
    bias = beta.astype(jnp.float32) - running_mean.astype(jnp.float32) * scale
    w_taps = (weight.reshape(Cout, 9).astype(jnp.float32) * scale[:, None]
              ).reshape(Cout * 9)

    gc = _pick_channel_group(N, Cin, mult, H, W, in_bytes, out_bytes)
    grid = (N, Cin // gc)

    flops = N * Cout * H * W * (2 * 9 + 3)              # 9 MACs + bias + leaky
    bytes_accessed = (N * Cin * H * W * in_bytes        # each input plane read once
                      + N * Cout * H * W * out_bytes    # output written once
                      + Cout * 10 * 4)                  # taps + bias

    out = pl.pallas_call(
        _dw3x3_bn_leaky_kernel,
        out_shape=jax.ShapeDtypeStruct((N, Cout, H, W), out_dtype),
        grid_spec=pltpu.PrefetchScalarGridSpec(
            num_scalar_prefetch=0,
            grid=grid,
            in_specs=[
                pl.BlockSpec((1, gc, H, W), lambda n, c: (n, c, 0, 0)),
                pl.BlockSpec(memory_space=pltpu.MemorySpace.SMEM),
                pl.BlockSpec(memory_space=pltpu.MemorySpace.SMEM),
            ],
            out_specs=pl.BlockSpec((1, gc * mult, H, W), lambda n, c: (n, c, 0, 0)),
            scratch_shapes=[pltpu.VMEM((H + 2, W + 2), jnp.float32)],
        ),
        compiler_params=pltpu.CompilerParams(
            dimension_semantics=("parallel", "parallel"),
            vmem_limit_bytes=32 * 1024 * 1024,   # blocks stay far below this
        ),
        cost_estimate=pl.CostEstimate(
            flops=flops, transcendentals=0, bytes_accessed=bytes_accessed),
    )(x_nchw, w_taps, bias)
    return out


def _reference(x, weight, gamma, beta, running_mean, running_var, eps=1e-5):
    # Pure-JAX reference: grouped (depthwise) conv + BN(eval) + LeakyReLU(0.01)
    Cin = x.shape[1]
    y = lax.conv_general_dilated(
        x.astype(jnp.float32), weight.astype(jnp.float32),
        window_strides=(1, 1), padding=((1, 1), (1, 1)),
        dimension_numbers=("NCHW", "OIHW", "NCHW"),
        feature_group_count=Cin,
        precision=lax.Precision.HIGHEST)
    scale = gamma / jnp.sqrt(running_var + eps)
    bias = beta - running_mean * scale
    y = y * scale[None, :, None, None] + bias[None, :, None, None]
    return jnp.where(y > 0, y, 0.01 * y)


if __name__ == "__main__":
    key = jax.random.PRNGKey(0)
    k_x, k_w, k_g, k_b, k_m, k_v = jax.random.split(key, 6)

    # depth_wise(in_planes=4, out_planes=8): out_planes multiple of in_planes
    N, Cin, Cout, H, W = 2, 4, 8, 16, 16

    x = jax.random.normal(k_x, (N, Cin, H, W), dtype=jnp.float32)
    weight = jax.random.normal(k_w, (Cout, 1, 3, 3), dtype=jnp.float32) * 0.1
    gamma = 1.0 + 0.1 * jax.random.normal(k_g, (Cout,), dtype=jnp.float32)
    beta = 0.1 * jax.random.normal(k_b, (Cout,), dtype=jnp.float32)
    running_mean = 0.1 * jax.random.normal(k_m, (Cout,), dtype=jnp.float32)
    running_var = jnp.abs(1.0 + 0.1 * jax.random.normal(k_v, (Cout,), dtype=jnp.float32))

    out = depth_wise_forward(x, weight, gamma, beta, running_mean, running_var)
    out = jax.block_until_ready(out)

    ref = _reference(x, weight, gamma, beta, running_mean, running_var)
    assert out.shape == (N, Cout, H, W)
    max_err = float(jnp.max(jnp.abs(out.astype(jnp.float32) - ref)))
    assert jnp.allclose(out.astype(jnp.float32), ref, atol=1e-4, rtol=1e-4), max_err

    print("KERNEL_OK")
</pallas_src>

<mosaic_0001>
module attributes {stable_mosaic.version = 11 : i64} {
  func.func @_dw3x3_bn_leaky_kernel(%arg0: i32, %arg1: i32, %arg2: memref<1x2x16x16xf32, #tpu.memory_space<vmem>>, %arg3: memref<72xf32, #tpu.memory_space<smem>>, %arg4: memref<8xf32, #tpu.memory_space<smem>>, %arg5: memref<1x4x16x16xf32, #tpu.memory_space<vmem>>, %arg6: memref<18x18xf32, #tpu.memory_space<vmem>>) attributes {dimension_semantics = [#tpu.dimension_semantics<parallel>, #tpu.dimension_semantics<parallel>], iteration_bounds = array<i64: 2, 2>, scalar_prefetch = 0 : i64, scratch_operands = 1 : i64, tpu.core_type = #tpu.core_type<tc>, window_params = [{transform_indices = @transform_0, window_bounds = array<i64: 1, 2, 16, 16>}, {transform_indices = @transform_1, window_bounds = array<i64: 72>}, {transform_indices = @transform_2, window_bounds = array<i64: 8>}, {transform_indices = @transform_3, window_bounds = array<i64: 1, 4, 16, 16>}]} {
    %cst = arith.constant 0.000000e+00 : f32
    %0 = vector.broadcast %cst : f32 to vector<18x18xf32>
    %c0 = arith.constant 0 : index
    %c0_0 = arith.constant 0 : index
    %1 = vector.load %arg6[%c0, %c0_0] : memref<18x18xf32, #tpu.memory_space<vmem>>, vector<18x18xf32>
    tpu.vector_store %arg6[%c0, %c0_0], %0 {strides = array<i32>} : memref<18x18xf32, #tpu.memory_space<vmem>>, vector<18x18xf32>,
    %c2_i32 = arith.constant 2 : i32
    %2 = arith.muli %arg1, %c2_i32 : i32
    %c0_i32 = arith.constant 0 : i32
    %3 = arith.addi %2, %c0_i32 : i32
    %c0_1 = arith.constant 0 : index
    %c0_2 = arith.constant 0 : index
    %c0_3 = arith.constant 0 : index
    %c0_4 = arith.constant 0 : index
    %4 = vector.load %arg2[%c0_1, %c0_2, %c0_3, %c0_4] : memref<1x2x16x16xf32, #tpu.memory_space<vmem>>, vector<1x1x16x16xf32>
    %5 = vector.shape_cast %4 : vector<1x1x16x16xf32> to vector<16x16xf32>
    %c1 = arith.constant 1 : index
    %c1_5 = arith.constant 1 : index
    %6 = vector.load %arg6[%c1, %c1_5] : memref<18x18xf32, #tpu.memory_space<vmem>>, vector<16x16xf32>
    tpu.vector_store %arg6[%c1, %c1_5], %5 {strides = array<i32>} : memref<18x18xf32, #tpu.memory_space<vmem>>, vector<16x16xf32>,
    %c0_6 = arith.constant 0 : index
    %c0_7 = arith.constant 0 : index
    %7 = vector.load %arg6[%c0_6, %c0_7] : memref<18x18xf32, #tpu.memory_space<vmem>>, vector<18x18xf32>
    %c2_i32_8 = arith.constant 2 : i32
    %8 = arith.muli %3, %c2_i32_8 : i32
    %c0_i32_9 = arith.constant 0 : i32
    %9 = arith.addi %8, %c0_i32_9 : i32
    %cst_10 = arith.constant 0.000000e+00 : f32
    %10 = vector.broadcast %cst_10 : f32 to vector<16x16xf32>
    %11 = vector.extract_strided_slice %7 {offsets = [0, 0], sizes = [16, 16], strides = [1, 1]} : vector<18x18xf32> to vector<16x16xf32>
    %c9_i32 = arith.constant 9 : i32
    %12 = arith.muli %9, %c9_i32 : i32
    %c0_i32_11 = arith.constant 0 : i32
    %13 = arith.addi %12, %c0_i32_11 : i32
    %c0_i32_12 = arith.constant 0 : i32
    %14 = arith.addi %13, %c0_i32_12 : i32
    %15 = arith.index_cast %14 : i32 to index
    %16 = memref.load %arg3[%15] : memref<72xf32, #tpu.memory_space<smem>>
    %17 = vector.broadcast %16 : f32 to vector<16x16xf32>
    %18 = arith.mulf %11, %17 : vector<16x16xf32>
    %19 = arith.addf %10, %18 : vector<16x16xf32>
    %20 = vector.extract_strided_slice %7 {offsets = [0, 1], sizes = [16, 16], strides = [1, 1]} : vector<18x18xf32> to vector<16x16xf32>
    %c9_i32_13 = arith.constant 9 : i32
    %21 = arith.muli %9, %c9_i32_13 : i32
    %c0_i32_14 = arith.constant 0 : i32
    %22 = arith.addi %21, %c0_i32_14 : i32
    %c1_i32 = arith.constant 1 : i32
    %23 = arith.addi %22, %c1_i32 : i32
    %24 = arith.index_cast %23 : i32 to index
    %25 = memref.load %arg3[%24] : memref<72xf32, #tpu.memory_space<smem>>
    %26 = vector.broadcast %25 : f32 to vector<16x16xf32>
    %27 = arith.mulf %20, %26 : vector<16x16xf32>
    %28 = arith.addf %19, %27 : vector<16x16xf32>
    %29 = vector.extract_strided_slice %7 {offsets = [0, 2], sizes = [16, 16], strides = [1, 1]} : vector<18x18xf32> to vector<16x16xf32>
    %c9_i32_15 = arith.constant 9 : i32
    %30 = arith.muli %9, %c9_i32_15 : i32
    %c0_i32_16 = arith.constant 0 : i32
    %31 = arith.addi %30, %c0_i32_16 : i32
    %c2_i32_17 = arith.constant 2 : i32
    %32 = arith.addi %31, %c2_i32_17 : i32
    %33 = arith.index_cast %32 : i32 to index
    %34 = memref.load %arg3[%33] : memref<72xf32, #tpu.memory_space<smem>>
    %35 = vector.broadcast %34 : f32 to vector<16x16xf32>
    %36 = arith.mulf %29, %35 : vector<16x16xf32>
    %37 = arith.addf %28, %36 : vector<16x16xf32>
    %38 = vector.extract_strided_slice %7 {offsets = [1, 0], sizes = [16, 16], strides = [1, 1]} : vector<18x18xf32> to vector<16x16xf32>
    %c9_i32_18 = arith.constant 9 : i32
    %39 = arith.muli %9, %c9_i32_18 : i32
    %c3_i32 = arith.constant 3 : i32
    %40 = arith.addi %39, %c3_i32 : i32
    %c0_i32_19 = arith.constant 0 : i32
    %41 = arith.addi %40, %c0_i32_19 : i32
    %42 = arith.index_cast %41 : i32 to index
    %43 = memref.load %arg3[%42] : memref<72xf32, #tpu.memory_space<smem>>
    %44 = vector.broadcast %43 : f32 to vector<16x16xf32>
    %45 = arith.mulf %38, %44 : vector<16x16xf32>
    %46 = arith.addf %37, %45 : vector<16x16xf32>
    %47 = vector.extract_strided_slice %7 {offsets = [1, 1], sizes = [16, 16], strides = [1, 1]} : vector<18x18xf32> to vector<16x16xf32>
    %c9_i32_20 = arith.constant 9 : i32
    %48 = arith.muli %9, %c9_i32_20 : i32
    %c3_i32_21 = arith.constant 3 : i32
    %49 = arith.addi %48, %c3_i32_21 : i32
    %c1_i32_22 = arith.constant 1 : i32
    %50 = arith.addi %49, %c1_i32_22 : i32
    %51 = arith.index_cast %50 : i32 to index
    %52 = memref.load %arg3[%51] : memref<72xf32, #tpu.memory_space<smem>>
    %53 = vector.broadcast %52 : f32 to vector<16x16xf32>
    %54 = arith.mulf %47, %53 : vector<16x16xf32>
    %55 = arith.addf %46, %54 : vector<16x16xf32>
    %56 = vector.extract_strided_slice %7 {offsets = [1, 2], sizes = [16, 16], strides = [1, 1]} : vector<18x18xf32> to vector<16x16xf32>
    %c9_i32_23 = arith.constant 9 : i32
    %57 = arith.muli %9, %c9_i32_23 : i32
    %c3_i32_24 = arith.constant 3 : i32
    %58 = arith.addi %57, %c3_i32_24 : i32
    %c2_i32_25 = arith.constant 2 : i32
    %59 = arith.addi %58, %c2_i32_25 : i32
    %60 = arith.index_cast %59 : i32 to index
    %61 = memref.load %arg3[%60] : memref<72xf32, #tpu.memory_space<smem>>
    %62 = vector.broadcast %61 : f32 to vector<16x16xf32>
    %63 = arith.mulf %56, %62 : vector<16x16xf32>
    %64 = arith.addf %55, %63 : vector<16x16xf32>
    %65 = vector.extract_strided_slice %7 {offsets = [2, 0], sizes = [16, 16], strides = [1, 1]} : vector<18x18xf32> to vector<16x16xf32>
    %c9_i32_26 = arith.constant 9 : i32
    %66 = arith.muli %9, %c9_i32_26 : i32
    %c6_i32 = arith.constant 6 : i32
    %67 = arith.addi %66, %c6_i32 : i32
    %c0_i32_27 = arith.constant 0 : i32
    %68 = arith.addi %67, %c0_i32_27 : i32
    %69 = arith.index_cast %68 : i32 to index
    %70 = memref.load %arg3[%69] : memref<72xf32, #tpu.memory_space<smem>>
    %71 = vector.broadcast %70 : f32 to vector<16x16xf32>
    %72 = arith.mulf %65, %71 : vector<16x16xf32>
    %73 = arith.addf %64, %72 : vector<16x16xf32>
    %74 = vector.extract_strided_slice %7 {offsets = [2, 1], sizes = [16, 16], strides = [1, 1]} : vector<18x18xf32> to vector<16x16xf32>
    %c9_i32_28 = arith.constant 9 : i32
    %75 = arith.muli %9, %c9_i32_28 : i32
    %c6_i32_29 = arith.constant 6 : i32
    %76 = arith.addi %75, %c6_i32_29 : i32
    %c1_i32_30 = arith.constant 1 : i32
    %77 = arith.addi %76, %c1_i32_30 : i32
    %78 = arith.index_cast %77 : i32 to index
    %79 = memref.load %arg3[%78] : memref<72xf32, #tpu.memory_space<smem>>
    %80 = vector.broadcast %79 : f32 to vector<16x16xf32>
    %81 = arith.mulf %74, %80 : vector<16x16xf32>
    %82 = arith.addf %73, %81 : vector<16x16xf32>
    %83 = vector.extract_strided_slice %7 {offsets = [2, 2], sizes = [16, 16], strides = [1, 1]} : vector<18x18xf32> to vector<16x16xf32>
    %c9_i32_31 = arith.constant 9 : i32
    %84 = arith.muli %9, %c9_i32_31 : i32
    %c6_i32_32 = arith.constant 6 : i32
    %85 = arith.addi %84, %c6_i32_32 : i32
    %c2_i32_33 = arith.constant 2 : i32
    %86 = arith.addi %85, %c2_i32_33 : i32
    %87 = arith.index_cast %86 : i32 to index
    %88 = memref.load %arg3[%87] : memref<72xf32, #tpu.memory_space<smem>>
    %89 = vector.broadcast %88 : f32 to vector<16x16xf32>
    %90 = arith.mulf %83, %89 : vector<16x16xf32>
    %91 = arith.addf %82, %90 : vector<16x16xf32>
    %92 = arith.index_cast %9 : i32 to index
    %93 = memref.load %arg4[%92] : memref<8xf32, #tpu.memory_space<smem>>
    %94 = vector.broadcast %93 : f32 to vector<16x16xf32>
    %95 = arith.addf %91, %94 : vector<16x16xf32>
    %cst_34 = arith.constant 0.00999999977 : f32
    %96 = vector.broadcast %cst_34 : f32 to vector<16x16xf32>
    %97 = arith.mulf %96, %95 : vector<16x16xf32>
    %98 = arith.maximumf %95, %97 : vector<16x16xf32>
    %c0_35 = arith.constant 0 : index
    %c0_36 = arith.constant 0 : index
    %c0_37 = arith.constant 0 : index
    %c0_38 = arith.constant 0 : index
    %99 = vector.load %arg5[%c0_35, %c0_36, %c0_37, %c0_38] : memref<1x4x16x16xf32, #tpu.memory_space<vmem>>, vector<1x1x16x16xf32>
    %100 = vector.shape_cast %99 : vector<1x1x16x16xf32> to vector<16x16xf32>
    %101 = vector.shape_cast %98 : vector<16x16xf32> to vector<1x1x16x16xf32>
    tpu.vector_store %arg5[%c0_35, %c0_36, %c0_37, %c0_38], %101 {strides = array<i32>} : memref<1x4x16x16xf32, #tpu.memory_space<vmem>>, vector<1x1x16x16xf32>,
    %c2_i32_39 = arith.constant 2 : i32
    %102 = arith.muli %3, %c2_i32_39 : i32
    %c1_i32_40 = arith.constant 1 : i32
    %103 = arith.addi %102, %c1_i32_40 : i32
    %cst_41 = arith.constant 0.000000e+00 : f32
    %104 = vector.broadcast %cst_41 : f32 to vector<16x16xf32>
    %105 = vector.extract_strided_slice %7 {offsets = [0, 0], sizes = [16, 16], strides = [1, 1]} : vector<18x18xf32> to vector<16x16xf32>
    %c9_i32_42 = arith.constant 9 : i32
    %106 = arith.muli %103, %c9_i32_42 : i32
    %c0_i32_43 = arith.constant 0 : i32
    %107 = arith.addi %106, %c0_i32_43 : i32
    %c0_i32_44 = arith.constant 0 : i32
    %108 = arith.addi %107, %c0_i32_44 : i32
    %109 = arith.index_cast %108 : i32 to index
    %110 = memref.load %arg3[%109] : memref<72xf32, #tpu.memory_space<smem>>
    %111 = vector.broadcast %110 : f32 to vector<16x16xf32>
    %112 = arith.mulf %105, %111 : vector<16x16xf32>
    %113 = arith.addf %104, %112 : vector<16x16xf32>
    %114 = vector.extract_strided_slice %7 {offsets = [0, 1], sizes = [16, 16], strides = [1, 1]} : vector<18x18xf32> to vector<16x16xf32>
    %c9_i32_45 = arith.constant 9 : i32
    %115 = arith.muli %103, %c9_i32_45 : i32
    %c0_i32_46 = arith.constant 0 : i32
    %116 = arith.addi %115, %c0_i32_46 : i32
    %c1_i32_47 = arith.constant 1 : i32
    %117 = arith.addi %116, %c1_i32_47 : i32
    %118 = arith.index_cast %117 : i32 to index
    %119 = memref.load %arg3[%118] : memref<72xf32, #tpu.memory_space<smem>>
    %120 = vector.broadcast %119 : f32 to vector<16x16xf32>
    %121 = arith.mulf %114, %120 : vector<16x16xf32>
    %122 = arith.addf %113, %121 : vector<16x16xf32>
    %123 = vector.extract_strided_slice %7 {offsets = [0, 2], sizes = [16, 16], strides = [1, 1]} : vector<18x18xf32> to vector<16x16xf32>
    %c9_i32_48 = arith.constant 9 : i32
    %124 = arith.muli %103, %c9_i32_48 : i32
    %c0_i32_49 = arith.constant 0 : i32
    %125 = arith.addi %124, %c0_i32_49 : i32
    %c2_i32_50 = arith.constant 2 : i32
    %126 = arith.addi %125, %c2_i32_50 : i32
    %127 = arith.index_cast %126 : i32 to index
    %128 = memref.load %arg3[%127] : memref<72xf32, #tpu.memory_space<smem>>
    %129 = vector.broadcast %128 : f32 to vector<16x16xf32>
    %130 = arith.mulf %123, %129 : vector<16x16xf32>
    %131 = arith.addf %122, %130 : vector<16x16xf32>
    %132 = vector.extract_strided_slice %7 {offsets = [1, 0], sizes = [16, 16], strides = [1, 1]} : vector<18x18xf32> to vector<16x16xf32>
    %c9_i32_51 = arith.constant 9 : i32
    %133 = arith.muli %103, %c9_i32_51 : i32
    %c3_i32_52 = arith.constant 3 : i32
    %134 = arith.addi %133, %c3_i32_52 : i32
    %c0_i32_53 = arith.constant 0 : i32
    %135 = arith.addi %134, %c0_i32_53 : i32
    %136 = arith.index_cast %135 : i32 to index
    %137 = memref.load %arg3[%136] : memref<72xf32, #tpu.memory_space<smem>>
    %138 = vector.broadcast %137 : f32 to vector<16x16xf32>
    %139 = arith.mulf %132, %138 : vector<16x16xf32>
    %140 = arith.addf %131, %139 : vector<16x16xf32>
    %141 = vector.extract_strided_slice %7 {offsets = [1, 1], sizes = [16, 16], strides = [1, 1]} : vector<18x18xf32> to vector<16x16xf32>
    %c9_i32_54 = arith.constant 9 : i32
    %142 = arith.muli %103, %c9_i32_54 : i32
    %c3_i32_55 = arith.constant 3 : i32
    %143 = arith.addi %142, %c3_i32_55 : i32
    %c1_i32_56 = arith.constant 1 : i32
    %144 = arith.addi %143, %c1_i32_56 : i32
    %145 = arith.index_cast %144 : i32 to index
    %146 = memref.load %arg3[%145] : memref<72xf32, #tpu.memory_space<smem>>
    %147 = vector.broadcast %146 : f32 to vector<16x16xf32>
    %148 = arith.mulf %141, %147 : vector<16x16xf32>
    %149 = arith.addf %140, %148 : vector<16x16xf32>
    %150 = vector.extract_strided_slice %7 {offsets = [1, 2], sizes = [16, 16], strides = [1, 1]} : vector<18x18xf32> to vector<16x16xf32>
    %c9_i32_57 = arith.constant 9 : i32
    %151 = arith.muli %103, %c9_i32_57 : i32
    %c3_i32_58 = arith.constant 3 : i32
    %152 = arith.addi %151, %c3_i32_58 : i32
    %c2_i32_59 = arith.constant 2 : i32
    %153 = arith.addi %152, %c2_i32_59 : i32
    %154 = arith.index_cast %153 : i32 to index
    %155 = memref.load %arg3[%154] : memref<72xf32, #tpu.memory_space<smem>>
    %156 = vector.broadcast %155 : f32 to vector<16x16xf32>
    %157 = arith.mulf %150, %156 : vector<16x16xf32>
    %158 = arith.addf %149, %157 : vector<16x16xf32>
    %159 = vector.extract_strided_slice %7 {offsets = [2, 0], sizes = [16, 16], strides = [1, 1]} : vector<18x18xf32> to vector<16x16xf32>
    %c9_i32_60 = arith.constant 9 : i32
    %160 = arith.muli %103, %c9_i32_60 : i32
    %c6_i32_61 = arith.constant 6 : i32
    %161 = arith.addi %160, %c6_i32_61 : i32
    %c0_i32_62 = arith.constant 0 : i32
    %162 = arith.addi %161, %c0_i32_62 : i32
    %163 = arith.index_cast %162 : i32 to index
    %164 = memref.load %arg3[%163] : memref<72xf32, #tpu.memory_space<smem>>
    %165 = vector.broadcast %164 : f32 to vector<16x16xf32>
    %166 = arith.mulf %159, %165 : vector<16x16xf32>
    %167 = arith.addf %158, %166 : vector<16x16xf32>
    %168 = vector.extract_strided_slice %7 {offsets = [2, 1], sizes = [16, 16], strides = [1, 1]} : vector<18x18xf32> to vector<16x16xf32>
    %c9_i32_63 = arith.constant 9 : i32
    %169 = arith.muli %103, %c9_i32_63 : i32
    %c6_i32_64 = arith.constant 6 : i32
    %170 = arith.addi %169, %c6_i32_64 : i32
    %c1_i32_65 = arith.constant 1 : i32
    %171 = arith.addi %170, %c1_i32_65 : i32
    %172 = arith.index_cast %171 : i32 to index
    %173 = memref.load %arg3[%172] : memref<72xf32, #tpu.memory_space<smem>>
    %174 = vector.broadcast %173 : f32 to vector<16x16xf32>
    %175 = arith.mulf %168, %174 : vector<16x16xf32>
    %176 = arith.addf %167, %175 : vector<16x16xf32>
    %177 = vector.extract_strided_slice %7 {offsets = [2, 2], sizes = [16, 16], strides = [1, 1]} : vector<18x18xf32> to vector<16x16xf32>
    %c9_i32_66 = arith.constant 9 : i32
    %178 = arith.muli %103, %c9_i32_66 : i32
    %c6_i32_67 = arith.constant 6 : i32
    %179 = arith.addi %178, %c6_i32_67 : i32
    %c2_i32_68 = arith.constant 2 : i32
    %180 = arith.addi %179, %c2_i32_68 : i32
    %181 = arith.index_cast %180 : i32 to index
    %182 = memref.load %arg3[%181] : memref<72xf32, #tpu.memory_space<smem>>
    %183 = vector.broadcast %182 : f32 to vector<16x16xf32>
    %184 = arith.mulf %177, %183 : vector<16x16xf32>
    %185 = arith.addf %176, %184 : vector<16x16xf32>
    %186 = arith.index_cast %103 : i32 to index
    %187 = memref.load %arg4[%186] : memref<8xf32, #tpu.memory_space<smem>>
    %188 = vector.broadcast %187 : f32 to vector<16x16xf32>
    %189 = arith.addf %185, %188 : vector<16x16xf32>
    %cst_69 = arith.constant 0.00999999977 : f32
    %190 = vector.broadcast %cst_69 : f32 to vector<16x16xf32>
    %191 = arith.mulf %190, %189 : vector<16x16xf32>
    %192 = arith.maximumf %189, %191 : vector<16x16xf32>
    %c0_70 = arith.constant 0 : index
    %c1_71 = arith.constant 1 : index
    %c0_72 = arith.constant 0 : index
    %c0_73 = arith.constant 0 : index
    %193 = vector.load %arg5[%c0_70, %c1_71, %c0_72, %c0_73] : memref<1x4x16x16xf32, #tpu.memory_space<vmem>>, vector<1x1x16x16xf32>
    %194 = vector.shape_cast %193 : vector<1x1x16x16xf32> to vector<16x16xf32>
    %195 = vector.shape_cast %192 : vector<16x16xf32> to vector<1x1x16x16xf32>
    tpu.vector_store %arg5[%c0_70, %c1_71, %c0_72, %c0_73], %195 {strides = array<i32>} : memref<1x4x16x16xf32, #tpu.memory_space<vmem>>, vector<1x1x16x16xf32>,
    %c2_i32_74 = arith.constant 2 : i32
    %196 = arith.muli %arg1, %c2_i32_74 : i32
    %c1_i32_75 = arith.constant 1 : i32
    %197 = arith.addi %196, %c1_i32_75 : i32
    %c0_76 = arith.constant 0 : index
    %c1_77 = arith.constant 1 : index
    %c0_78 = arith.constant 0 : index
    %c0_79 = arith.constant 0 : index
    %198 = vector.load %arg2[%c0_76, %c1_77, %c0_78, %c0_79] : memref<1x2x16x16xf32, #tpu.memory_space<vmem>>, vector<1x1x16x16xf32>
    %199 = vector.shape_cast %198 : vector<1x1x16x16xf32> to vector<16x16xf32>
    %c1_80 = arith.constant 1 : index
    %c1_81 = arith.constant 1 : index
    %200 = vector.load %arg6[%c1_80, %c1_81] : memref<18x18xf32, #tpu.memory_space<vmem>>, vector<16x16xf32>
    tpu.vector_store %arg6[%c1_80, %c1_81], %199 {strides = array<i32>} : memref<18x18xf32, #tpu.memory_space<vmem>>, vector<16x16xf32>,
    %c0_82 = arith.constant 0 : index
    %c0_83 = arith.constant 0 : index
    %201 = vector.load %arg6[%c0_82, %c0_83] : memref<18x18xf32, #tpu.memory_space<vmem>>, vector<18x18xf32>
    %c2_i32_84 = arith.constant 2 : i32
    %202 = arith.muli %197, %c2_i32_84 : i32
    %c0_i32_85 = arith.constant 0 : i32
    %203 = arith.addi %202, %c0_i32_85 : i32
    %cst_86 = arith.constant 0.000000e+00 : f32
    %204 = vector.broadcast %cst_86 : f32 to vector<16x16xf32>
    %205 = vector.extract_strided_slice %201 {offsets = [0, 0], sizes = [16, 16], strides = [1, 1]} : vector<18x18xf32> to vector<16x16xf32>
    %c9_i32_87 = arith.constant 9 : i32
    %206 = arith.muli %203, %c9_i32_87 : i32
    %c0_i32_88 = arith.constant 0 : i32
    %207 = arith.addi %206, %c0_i32_88 : i32
    %c0_i32_89 = arith.constant 0 : i32
    %208 = arith.addi %207, %c0_i32_89 : i32
    %209 = arith.index_cast %208 : i32 to index
    %210 = memref.load %arg3[%209] : memref<72xf32, #tpu.memory_space<smem>>
    %211 = vector.broadcast %210 : f32 to vector<16x16xf32>
    %212 = arith.mulf %205, %211 : vector<16x16xf32>
    %213 = arith.addf %204, %212 : vector<16x16xf32>
    %214 = vector.extract_strided_slice %201 {offsets = [0, 1], sizes = [16, 16], strides = [1, 1]} : vector<18x18xf32> to vector<16x16xf32>
    %c9_i32_90 = arith.constant 9 : i32
    %215 = arith.muli %203, %c9_i32_90 : i32
    %c0_i32_91 = arith.constant 0 : i32
    %216 = arith.addi %215, %c0_i32_91 : i32
    %c1_i32_92 = arith.constant 1 : i32
    %217 = arith.addi %216, %c1_i32_92 : i32
    %218 = arith.index_cast %217 : i32 to index
    %219 = memref.load %arg3[%218] : memref<72xf32, #tpu.memory_space<smem>>
    %220 = vector.broadcast %219 : f32 to vector<16x16xf32>
    %221 = arith.mulf %214, %220 : vector<16x16xf32>
    %222 = arith.addf %213, %221 : vector<16x16xf32>
    %223 = vector.extract_strided_slice %201 {offsets = [0, 2], sizes = [16, 16], strides = [1, 1]} : vector<18x18xf32> to vector<16x16xf32>
    %c9_i32_93 = arith.constant 9 : i32
    %224 = arith.muli %203, %c9_i32_93 : i32
    %c0_i32_94 = arith.constant 0 : i32
    %225 = arith.addi %224, %c0_i32_94 : i32
    %c2_i32_95 = arith.constant 2 : i32
    %226 = arith.addi %225, %c2_i32_95 : i32
    %227 = arith.index_cast %226 : i32 to index
    %228 = memref.load %arg3[%227] : memref<72xf32, #tpu.memory_space<smem>>
    %229 = vector.broadcast %228 : f32 to vector<16x16xf32>
    %230 = arith.mulf %223, %229 : vector<16x16xf32>
    %231 = arith.addf %222, %230 : vector<16x16xf32>
    %232 = vector.extract_strided_slice %201 {offsets = [1, 0], sizes = [16, 16], strides = [1, 1]} : vector<18x18xf32> to vector<16x16xf32>
    %c9_i32_96 = arith.constant 9 : i32
    %233 = arith.muli %203, %c9_i32_96 : i32
    %c3_i32_97 = arith.constant 3 : i32
    %234 = arith.addi %233, %c3_i32_97 : i32
    %c0_i32_98 = arith.constant 0 : i32
    %235 = arith.addi %234, %c0_i32_98 : i32
    %236 = arith.index_cast %235 : i32 to index
    %237 = memref.load %arg3[%236] : memref<72xf32, #tpu.memory_space<smem>>
    %238 = vector.broadcast %237 : f32 to vector<16x16xf32>
    %239 = arith.mulf %232, %238 : vector<16x16xf32>
    %240 = arith.addf %231, %239 : vector<16x16xf32>
    %241 = vector.extract_strided_slice %201 {offsets = [1, 1], sizes = [16, 16], strides = [1, 1]} : vector<18x18xf32> to vector<16x16xf32>
    %c9_i32_99 = arith.constant 9 : i32
    %242 = arith.muli %203, %c9_i32_99 : i32
    %c3_i32_100 = arith.constant 3 : i32
    %243 = arith.addi %242, %c3_i32_100 : i32
    %c1_i32_101 = arith.constant 1 : i32
    %244 = arith.addi %243, %c1_i32_101 : i32
    %245 = arith.index_cast %244 : i32 to index
    %246 = memref.load %arg3[%245] : memref<72xf32, #tpu.memory_space<smem>>
    %247 = vector.broadcast %246 : f32 to vector<16x16xf32>
    %248 = arith.mulf %241, %247 : vector<16x16xf32>
    %249 = arith.addf %240, %248 : vector<16x16xf32>
    %250 = vector.extract_strided_slice %201 {offsets = [1, 2], sizes = [16, 16], strides = [1, 1]} : vector<18x18xf32> to vector<16x16xf32>
    %c9_i32_102 = arith.constant 9 : i32
    %251 = arith.muli %203, %c9_i32_102 : i32
    %c3_i32_103 = arith.constant 3 : i32
    %252 = arith.addi %251, %c3_i32_103 : i32
    %c2_i32_104 = arith.constant 2 : i32
    %253 = arith.addi %252, %c2_i32_104 : i32
    %254 = arith.index_cast %253 : i32 to index
    %255 = memref.load %arg3[%254] : memref<72xf32, #tpu.memory_space<smem>>
    %256 = vector.broadcast %255 : f32 to vector<16x16xf32>
    %257 = arith.mulf %250, %256 : vector<16x16xf32>
    %258 = arith.addf %249, %257 : vector<16x16xf32>
    %259 = vector.extract_strided_slice %201 {offsets = [2, 0], sizes = [16, 16], strides = [1, 1]} : vector<18x18xf32> to vector<16x16xf32>
    %c9_i32_105 = arith.constant 9 : i32
    %260 = arith.muli %203, %c9_i32_105 : i32
    %c6_i32_106 = arith.constant 6 : i32
    %261 = arith.addi %260, %c6_i32_106 : i32
    %c0_i32_107 = arith.constant 0 : i32
    %262 = arith.addi %261, %c0_i32_107 : i32
    %263 = arith.index_cast %262 : i32 to index
    %264 = memref.load %arg3[%263] : memref<72xf32, #tpu.memory_space<smem>>
    %265 = vector.broadcast %264 : f32 to vector<16x16xf32>
    %266 = arith.mulf %259, %265 : vector<16x16xf32>
    %267 = arith.addf %258, %266 : vector<16x16xf32>
    %268 = vector.extract_strided_slice %201 {offsets = [2, 1], sizes = [16, 16], strides = [1, 1]} : vector<18x18xf32> to vector<16x16xf32>
    %c9_i32_108 = arith.constant 9 : i32
    %269 = arith.muli %203, %c9_i32_108 : i32
    %c6_i32_109 = arith.constant 6 : i32
    %270 = arith.addi %269, %c6_i32_109 : i32
    %c1_i32_110 = arith.constant 1 : i32
    %271 = arith.addi %270, %c1_i32_110 : i32
    %272 = arith.index_cast %271 : i32 to index
    %273 = memref.load %arg3[%272] : memref<72xf32, #tpu.memory_space<smem>>
    %274 = vector.broadcast %273 : f32 to vector<16x16xf32>
    %275 = arith.mulf %268, %274 : vector<16x16xf32>
    %276 = arith.addf %267, %275 : vector<16x16xf32>
    %277 = vector.extract_strided_slice %201 {offsets = [2, 2], sizes = [16, 16], strides = [1, 1]} : vector<18x18xf32> to vector<16x16xf32>
    %c9_i32_111 = arith.constant 9 : i32
    %278 = arith.muli %203, %c9_i32_111 : i32
    %c6_i32_112 = arith.constant 6 : i32
    %279 = arith.addi %278, %c6_i32_112 : i32
    %c2_i32_113 = arith.constant 2 : i32
    %280 = arith.addi %279, %c2_i32_113 : i32
    %281 = arith.index_cast %280 : i32 to index
    %282 = memref.load %arg3[%281] : memref<72xf32, #tpu.memory_space<smem>>
    %283 = vector.broadcast %282 : f32 to vector<16x16xf32>
    %284 = arith.mulf %277, %283 : vector<16x16xf32>
    %285 = arith.addf %276, %284 : vector<16x16xf32>
    %286 = arith.index_cast %203 : i32 to index
    %287 = memref.load %arg4[%286] : memref<8xf32, #tpu.memory_space<smem>>
    %288 = vector.broadcast %287 : f32 to vector<16x16xf32>
    %289 = arith.addf %285, %288 : vector<16x16xf32>
    %cst_114 = arith.constant 0.00999999977 : f32
    %290 = vector.broadcast %cst_114 : f32 to vector<16x16xf32>
    %291 = arith.mulf %290, %289 : vector<16x16xf32>
    %292 = arith.maximumf %289, %291 : vector<16x16xf32>
    %c0_115 = arith.constant 0 : index
    %c2 = arith.constant 2 : index
    %c0_116 = arith.constant 0 : index
    %c0_117 = arith.constant 0 : index
    %293 = vector.load %arg5[%c0_115, %c2, %c0_116, %c0_117] : memref<1x4x16x16xf32, #tpu.memory_space<vmem>>, vector<1x1x16x16xf32>
    %294 = vector.shape_cast %293 : vector<1x1x16x16xf32> to vector<16x16xf32>
    %295 = vector.shape_cast %292 : vector<16x16xf32> to vector<1x1x16x16xf32>
    tpu.vector_store %arg5[%c0_115, %c2, %c0_116, %c0_117], %295 {strides = array<i32>} : memref<1x4x16x16xf32, #tpu.memory_space<vmem>>, vector<1x1x16x16xf32>,
    %c2_i32_118 = arith.constant 2 : i32
    %296 = arith.muli %197, %c2_i32_118 : i32
    %c1_i32_119 = arith.constant 1 : i32
    %297 = arith.addi %296, %c1_i32_119 : i32
    %cst_120 = arith.constant 0.000000e+00 : f32
    %298 = vector.broadcast %cst_120 : f32 to vector<16x16xf32>
    %299 = vector.extract_strided_slice %201 {offsets = [0, 0], sizes = [16, 16], strides = [1, 1]} : vector<18x18xf32> to vector<16x16xf32>
    %c9_i32_121 = arith.constant 9 : i32
    %300 = arith.muli %297, %c9_i32_121 : i32
    %c0_i32_122 = arith.constant 0 : i32
    %301 = arith.addi %300, %c0_i32_122 : i32
    %c0_i32_123 = arith.constant 0 : i32
    %302 = arith.addi %301, %c0_i32_123 : i32
    %303 = arith.index_cast %302 : i32 to index
    %304 = memref.load %arg3[%303] : memref<72xf32, #tpu.memory_space<smem>>
    %305 = vector.broadcast %304 : f32 to vector<16x16xf32>
    %306 = arith.mulf %299, %305 : vector<16x16xf32>
    %307 = arith.addf %298, %306 : vector<16x16xf32>
    %308 = vector.extract_strided_slice %201 {offsets = [0, 1], sizes = [16, 16], strides = [1, 1]} : vector<18x18xf32> to vector<16x16xf32>
    %c9_i32_124 = arith.constant 9 : i32
    %309 = arith.muli %297, %c9_i32_124 : i32
    %c0_i32_125 = arith.constant 0 : i32
    %310 = arith.addi %309, %c0_i32_125 : i32
    %c1_i32_126 = arith.constant 1 : i32
    %311 = arith.addi %310, %c1_i32_126 : i32
    %312 = arith.index_cast %311 : i32 to index
    %313 = memref.load %arg3[%312] : memref<72xf32, #tpu.memory_space<smem>>
    %314 = vector.broadcast %313 : f32 to vector<16x16xf32>
    %315 = arith.mulf %308, %314 : vector<16x16xf32>
    %316 = arith.addf %307, %315 : vector<16x16xf32>
    %317 = vector.extract_strided_slice %201 {offsets = [0, 2], sizes = [16, 16], strides = [1, 1]} : vector<18x18xf32> to vector<16x16xf32>
    %c9_i32_127 = arith.constant 9 : i32
    %318 = arith.muli %297, %c9_i32_127 : i32
    %c0_i32_128 = arith.constant 0 : i32
    %319 = arith.addi %318, %c0_i32_128 : i32
    %c2_i32_129 = arith.constant 2 : i32
    %320 = arith.addi %319, %c2_i32_129 : i32
    %321 = arith.index_cast %320 : i32 to index
    %322 = memref.load %arg3[%321] : memref<72xf32, #tpu.memory_space<smem>>
    %323 = vector.broadcast %322 : f32 to vector<16x16xf32>
    %324 = arith.mulf %317, %323 : vector<16x16xf32>
    %325 = arith.addf %316, %324 : vector<16x16xf32>
    %326 = vector.extract_strided_slice %201 {offsets = [1, 0], sizes = [16, 16], strides = [1, 1]} : vector<18x18xf32> to vector<16x16xf32>
    %c9_i32_130 = arith.constant 9 : i32
    %327 = arith.muli %297, %c9_i32_130 : i32
    %c3_i32_131 = arith.constant 3 : i32
    %328 = arith.addi %327, %c3_i32_131 : i32
    %c0_i32_132 = arith.constant 0 : i32
    %329 = arith.addi %328, %c0_i32_132 : i32
    %330 = arith.index_cast %329 : i32 to index
    %331 = memref.load %arg3[%330] : memref<72xf32, #tpu.memory_space<smem>>
    %332 = vector.broadcast %331 : f32 to vector<16x16xf32>
    %333 = arith.mulf %326, %332 : vector<16x16xf32>
    %334 = arith.addf %325, %333 : vector<16x16xf32>
    %335 = vector.extract_strided_slice %201 {offsets = [1, 1], sizes = [16, 16], strides = [1, 1]} : vector<18x18xf32> to vector<16x16xf32>
    %c9_i32_133 = arith.constant 9 : i32
    %336 = arith.muli %297, %c9_i32_133 : i32
    %c3_i32_134 = arith.constant 3 : i32
    %337 = arith.addi %336, %c3_i32_134 : i32
    %c1_i32_135 = arith.constant 1 : i32
    %338 = arith.addi %337, %c1_i32_135 : i32
    %339 = arith.index_cast %338 : i32 to index
    %340 = memref.load %arg3[%339] : memref<72xf32, #tpu.memory_space<smem>>
    %341 = vector.broadcast %340 : f32 to vector<16x16xf32>
    %342 = arith.mulf %335, %341 : vector<16x16xf32>
    %343 = arith.addf %334, %342 : vector<16x16xf32>
    %344 = vector.extract_strided_slice %201 {offsets = [1, 2], sizes = [16, 16], strides = [1, 1]} : vector<18x18xf32> to vector<16x16xf32>
    %c9_i32_136 = arith.constant 9 : i32
    %345 = arith.muli %297, %c9_i32_136 : i32
    %c3_i32_137 = arith.constant 3 : i32
    %346 = arith.addi %345, %c3_i32_137 : i32
    %c2_i32_138 = arith.constant 2 : i32
    %347 = arith.addi %346, %c2_i32_138 : i32
    %348 = arith.index_cast %347 : i32 to index
    %349 = memref.load %arg3[%348] : memref<72xf32, #tpu.memory_space<smem>>
    %350 = vector.broadcast %349 : f32 to vector<16x16xf32>
    %351 = arith.mulf %344, %350 : vector<16x16xf32>
    %352 = arith.addf %343, %351 : vector<16x16xf32>
    %353 = vector.extract_strided_slice %201 {offsets = [2, 0], sizes = [16, 16], strides = [1, 1]} : vector<18x18xf32> to vector<16x16xf32>
    %c9_i32_139 = arith.constant 9 : i32
    %354 = arith.muli %297, %c9_i32_139 : i32
    %c6_i32_140 = arith.constant 6 : i32
    %355 = arith.addi %354, %c6_i32_140 : i32
    %c0_i32_141 = arith.constant 0 : i32
    %356 = arith.addi %355, %c0_i32_141 : i32
    %357 = arith.index_cast %356 : i32 to index
    %358 = memref.load %arg3[%357] : memref<72xf32, #tpu.memory_space<smem>>
    %359 = vector.broadcast %358 : f32 to vector<16x16xf32>
    %360 = arith.mulf %353, %359 : vector<16x16xf32>
    %361 = arith.addf %352, %360 : vector<16x16xf32>
    %362 = vector.extract_strided_slice %201 {offsets = [2, 1], sizes = [16, 16], strides = [1, 1]} : vector<18x18xf32> to vector<16x16xf32>
    %c9_i32_142 = arith.constant 9 : i32
    %363 = arith.muli %297, %c9_i32_142 : i32
    %c6_i32_143 = arith.constant 6 : i32
    %364 = arith.addi %363, %c6_i32_143 : i32
    %c1_i32_144 = arith.constant 1 : i32
    %365 = arith.addi %364, %c1_i32_144 : i32
    %366 = arith.index_cast %365 : i32 to index
    %367 = memref.load %arg3[%366] : memref<72xf32, #tpu.memory_space<smem>>
    %368 = vector.broadcast %367 : f32 to vector<16x16xf32>
    %369 = arith.mulf %362, %368 : vector<16x16xf32>
    %370 = arith.addf %361, %369 : vector<16x16xf32>
    %371 = vector.extract_strided_slice %201 {offsets = [2, 2], sizes = [16, 16], strides = [1, 1]} : vector<18x18xf32> to vector<16x16xf32>
    %c9_i32_145 = arith.constant 9 : i32
    %372 = arith.muli %297, %c9_i32_145 : i32
    %c6_i32_146 = arith.constant 6 : i32
    %373 = arith.addi %372, %c6_i32_146 : i32
    %c2_i32_147 = arith.constant 2 : i32
    %374 = arith.addi %373, %c2_i32_147 : i32
    %375 = arith.index_cast %374 : i32 to index
    %376 = memref.load %arg3[%375] : memref<72xf32, #tpu.memory_space<smem>>
    %377 = vector.broadcast %376 : f32 to vector<16x16xf32>
    %378 = arith.mulf %371, %377 : vector<16x16xf32>
    %379 = arith.addf %370, %378 : vector<16x16xf32>
    %380 = arith.index_cast %297 : i32 to index
    %381 = memref.load %arg4[%380] : memref<8xf32, #tpu.memory_space<smem>>
    %382 = vector.broadcast %381 : f32 to vector<16x16xf32>
    %383 = arith.addf %379, %382 : vector<16x16xf32>
    %cst_148 = arith.constant 0.00999999977 : f32
    %384 = vector.broadcast %cst_148 : f32 to vector<16x16xf32>
    %385 = arith.mulf %384, %383 : vector<16x16xf32>
    %386 = arith.maximumf %383, %385 : vector<16x16xf32>
    %c0_149 = arith.constant 0 : index
    %c3 = arith.constant 3 : index
    %c0_150 = arith.constant 0 : index
    %c0_151 = arith.constant 0 : index
    %387 = vector.load %arg5[%c0_149, %c3, %c0_150, %c0_151] : memref<1x4x16x16xf32, #tpu.memory_space<vmem>>, vector<1x1x16x16xf32>
    %388 = vector.shape_cast %387 : vector<1x1x16x16xf32> to vector<16x16xf32>
    %389 = vector.shape_cast %386 : vector<16x16xf32> to vector<1x1x16x16xf32>
    tpu.vector_store %arg5[%c0_149, %c3, %c0_150, %c0_151], %389 {strides = array<i32>} : memref<1x4x16x16xf32, #tpu.memory_space<vmem>>, vector<1x1x16x16xf32>,
    return
  }
  func.func @transform_0(%arg0: i32, %arg1: i32) -> (i32, i32, i32, i32) {
    %c0_i32 = arith.constant 0 : i32
    %c0_i32_0 = arith.constant 0 : i32
    %c0_i32_1 = arith.constant 0 : i32
    return %arg0, %arg1, %c0_i32, %c0_i32_0 : i32, i32, i32, i32
  }
  func.func @transform_1(%arg0: i32, %arg1: i32) -> i32 {
    %c0_i32 = arith.constant 0 : i32
    %c0_i32_0 = arith.constant 0 : i32
    return %c0_i32 : i32
  }
  func.func @transform_2(%arg0: i32, %arg1: i32) -> i32 {
    %c0_i32 = arith.constant 0 : i32
    %c0_i32_0 = arith.constant 0 : i32
    return %c0_i32 : i32
  }
  func.func @transform_3(%arg0: i32, %arg1: i32) -> (i32, i32, i32, i32) {
    %c0_i32 = arith.constant 0 : i32
    %c0_i32_0 = arith.constant 0 : i32
    %c0_i32_1 = arith.constant 0 : i32
    return %arg0, %arg1, %c0_i32, %c0_i32_0 : i32, i32, i32, i32
  }
}

</mosaic_0001>

<llo_original>
// kernel: tpu_custom_call.1
$region0: #{tpu_custom_call.1}
  #allocation0 [shape = 'u32[]', space=smem, size = 0x4, offset = 0x4, fixed_abs, tag = 'smem constant byte address 0x4 - core index']
  #allocation1 [shape = 'u32[144,128]{1,0:T(1,128)}', space=vmem, size = 0x12000, scoped, tag = 'internal scratch']
  #allocation2 [shape = 'f32[18,18]{1,0:T(8,128)}', space=vmem, size = 0x3000, scoped, tag = 'scratch operand']
  %s0 = inlined_call_operand.hbm [shape: f32[2,4,16,16], index: 0, kind: input, shape index: {}]
  %s1 = inlined_call_operand.vmem [shape: f32[72], index: 1, kind: input, shape index: {}]
  %s2 = inlined_call_operand.vmem [shape: f32[8], index: 2, kind: input, shape index: {}]
  %s3 = inlined_call_operand.hbm [shape: f32[2,8,16,16], index: 3, kind: output, shape index: {}]
  %s4 = sld [smem:[#allocation0]]
  $region57: #{tpu_custom_call.1} parent=0
    _
  %s6 = ssub.s32 1, %s4
  %s7 = scalar_select 0, %s6, %s4
  $region1: #{tpu_custom_call.1} parent=0
    #allocation3 [shape = 'u8[32768]{0}', space=vmem, size = 0x8000, scoped, tag = 'input window, operand 0']
    #allocation4 [shape = 's32[2]{0}', space=sflag, size = 0x8, scoped, tag = 'scoped memory for tpu_custom_call.1']
    #allocation5 [shape = 's32[2]{0}', space=sflag, size = 0x8, scoped, tag = 'scoped memory for tpu_custom_call.1']
    #allocation6 [shape = 's32[2]{0}', space=sflag, size = 0x8, scoped, tag = 'scoped memory for tpu_custom_call.1']
    #allocation7 [shape = 'u8[512]{0}', space=smem, size = 0x200, scoped, tag = 'input window, operand 1, single buffered']
    #allocation8 [shape = 'u8[512]{0}', space=smem, size = 0x200, scoped, tag = 'input window, operand 2, single buffered']
    #allocation9 [shape = 's32[1]{0}', space=sflag, size = 0x4, scoped, tag = 'scoped memory for tpu_custom_call.1']
    #allocation10 [shape = 'u8[65536]{0}', space=vmem, size = 0x10000, scoped, tag = 'output window, operand 0']
    %8 = vsyncpa [#allocation4], 0
    %s9 = scalar_lea.sflag [#allocation4], 1
    %10 = vsyncpa %s9, 0
    %11 = vsyncpa [#allocation6], 0
    %12 = vsyncpa [#allocation9], 0
    %13 = vsyncpa [#allocation5], 0
    %s14 = scalar_lea.sflag [#allocation5], 1
    %15 = vsyncpa %s14, 0
    loop: start=0, step=1, limit=6
    $region2: #{tpu_custom_call.1} parent=1 // loop_pre_header
      _
    $region3: #{tpu_custom_call.1} parent=1 // loop_header
      %s17 = sphi 0, %s21
      %p18 = scmp.ge.s32.totalorder %s17, 6
      %s24 = sphi 0, %s36
      %s25 = sphi 0, %s32
      %s26 = sphi 0, %s24
      %s27 = sphi 0, %s25
      %s28 = sphi 0, %s26
      %s29 = sphi 0, %s27
      %s41 = sphi 0, %s43
      %s44 = sphi 0, %s41
      %s45 = sphi 0, %s44
      %s61 = sphi 0, %s45
      %s65 = sphi 0, %s65
      %s67 = sphi 0, %s65
      %s68 = sphi 0, %s67
      %s82 = sphi 0, %s68
      %s86 = sphi 0, %s86
      %s88 = sphi 0, %s86
      %s89 = sphi 0, %s88
      %s103 = sphi 0, %s89
      %s111 = sphi 0, %s113
      %s114 = sphi 0, %s111
      %s115 = sphi 0, %s114
      %s131 = sphi 0, %s115
    $region4: #{tpu_custom_call.1} parent=1 // loop_header_branch
      %20 = sbr.rel (%p18) target = $region8
    $region5: #{tpu_custom_call.1} parent=1 // loop_body
      %s22 = ssub.s32 %s17, 1
      %s23 = ssub.s32 %s17, 2
      %s30 = sadd.s32 1, %s25
      %p31 = scmp.ge.s32.totalorder %s30, 2
      %s32 = scalar_select %p31, 0, %s30
      %s33 = sadd.s32 1, %s24
      %s34 = scalar_select %p31, %s33, %s24
      %p35 = scmp.ge.s32.totalorder %s34, 2
      %s36 = scalar_select %p35, 0, %s34
      %s37 = ssub.s32 %s24, %s36
      %s38 = ssub.s32 %s25, %s32
      %s39 = sor.u32 %s37, %s38
      %p40 = scmp.eq.s32.totalorder %s39, 0
      %s42 = sadd.s32 %s41, 1
      %s43 = scalar_select %p40, %s41, %s42
      %p46 = pneg %p40
      %p47 = scmp.eq.s32.totalorder %s17, 3
      %p48 = por %p46, %p47
      %p49 = scmp.ne.s32.totalorder %s41, %s44
      %p50 = scmp.eq.s32.totalorder %s17, 0
      %p51 = por %p49, %p50
      %p52 = scmp.ne.s32.totalorder %s41, %s44
      %p53 = scmp.eq.s32.totalorder %s22, 3
      %p54 = por %p52, %p53
      %p55 = scmp.ne.s32.totalorder %s44, %s45
      %p56 = scmp.eq.s32.totalorder %s22, 0
      %p57 = por %p55, %p56
      %p58 = scmp.ne.s32.totalorder %s44, %s45
      %p59 = scmp.eq.s32.totalorder %s23, 3
      %p60 = por %p58, %p59
      %p62 = scmp.ne.s32.totalorder %s45, %s61
      %p63 = scmp.eq.s32.totalorder %s23, 0
      %p64 = por %p62, %p63
      %s66 = sadd.s32 %s65, 1
      %p69 = scmp.eq.s32.totalorder %s17, 3
      %p70 = scmp.ne.s32.totalorder %s65, %s67
      %p71 = scmp.eq.s32.totalorder %s17, 0
      %p72 = por %p70, %p71
      %p73 = scmp.ne.s32.totalorder %s65, %s67
      %p74 = scmp.eq.s32.totalorder %s22, 3
      %p75 = por %p73, %p74
      %p76 = scmp.ne.s32.totalorder %s67, %s68
      %p77 = scmp.eq.s32.totalorder %s22, 0
      %p78 = por %p76, %p77
      %p79 = scmp.ne.s32.totalorder %s67, %s68
      %p80 = scmp.eq.s32.totalorder %s23, 3
      %p81 = por %p79, %p80
      %p83 = scmp.ne.s32.totalorder %s68, %s82
      %p84 = scmp.eq.s32.totalorder %s23, 0
      %p85 = por %p83, %p84
      %s87 = sadd.s32 %s86, 1
      %p90 = scmp.eq.s32.totalorder %s17, 3
      %p91 = scmp.ne.s32.totalorder %s86, %s88
      %p92 = scmp.eq.s32.totalorder %s17, 0
      %p93 = por %p91, %p92
      %p94 = scmp.ne.s32.totalorder %s86, %s88
      %p95 = scmp.eq.s32.totalorder %s22, 3
      %p96 = por %p94, %p95
      %p97 = scmp.ne.s32.totalorder %s88, %s89
      %p98 = scmp.eq.s32.totalorder %s22, 0
      %p99 = por %p97, %p98
      %p100 = scmp.ne.s32.totalorder %s88, %s89
      %p101 = scmp.eq.s32.totalorder %s23, 3
      %p102 = por %p100, %p101
      %p104 = scmp.ne.s32.totalorder %s89, %s103
      %p105 = scmp.eq.s32.totalorder %s23, 0
      %p106 = por %p104, %p105
      %s107 = ssub.s32 %s24, %s36
      %s108 = ssub.s32 %s25, %s32
      %s109 = sor.u32 %s107, %s108
      %p110 = scmp.eq.s32.totalorder %s109, 0
      %s112 = sadd.s32 %s111, 1
      %s113 = scalar_select %p110, %s111, %s112
      %p116 = pneg %p110
      %p117 = scmp.eq.s32.totalorder %s17, 3
      %p118 = por %p116, %p117
      %p119 = scmp.ne.s32.totalorder %s111, %s114
      %p120 = scmp.eq.s32.totalorder %s17, 0
      %p121 = por %p119, %p120
      %p122 = scmp.ne.s32.totalorder %s111, %s114
      %p123 = scmp.eq.s32.totalorder %s22, 3
      %p124 = por %p122, %p123
      %p125 = scmp.ne.s32.totalorder %s114, %s115
      %p126 = scmp.eq.s32.totalorder %s22, 0
      %p127 = por %p125, %p126
      %p128 = scmp.ne.s32.totalorder %s114, %s115
      %p129 = scmp.eq.s32.totalorder %s23, 3
      %p130 = por %p128, %p129
      %p132 = scmp.ne.s32.totalorder %s115, %s131
      %p133 = scmp.eq.s32.totalorder %s23, 0
      %p134 = por %p132, %p133
      %p135 = scmp.le.s32.totalorder 1, %s17
      %p136 = scmp.lt.s32.totalorder %s17, 5
      %p137 = pnand %p135, %p136
      %p138 = pneg %p137
      // Predicated region
      $region9: #{tpu_custom_call.1} parent=5 // pred_check
        _
      $region10: #{tpu_custom_call.1} parent=5 // pred_check_branch
        %140 = sbr.rel (%p137) target = $region12
      $region11: #{tpu_custom_call.1} parent=5 // pred_region
        %s141 = ssub.s32 %s17, 1
        // Predicated region
        $region13: #{tpu_custom_call.1} parent=11 // pred_check
          %p142 = pneg %p78
        $region14: #{tpu_custom_call.1} parent=11 // pred_check_branch
          %144 = sbr.rel (%p142) target = $region16
        $region15: #{tpu_custom_call.1} parent=11 // pred_region
          %s146 = ssub.s32 16, 16
          %147 = vsyncadd [#allocation6], %s146
          %s149 = sshll.u32 %s1, 4
          %s150 = int_to_ptr.vmem [resolvable:$true] %s149
          %152 = dma.vmem_to_smem %s150, 16, [#allocation7], [#allocation6]
        $region16: #{tpu_custom_call.1} parent=11 // pred_fallthru
          _
        // Predicated region
        $region17: #{tpu_custom_call.1} parent=11 // pred_check
          %p153 = pneg %p99
        $region18: #{tpu_custom_call.1} parent=11 // pred_check_branch
          %155 = sbr.rel (%p153) target = $region20
        $region19: #{tpu_custom_call.1} parent=11 // pred_region
          %s157 = ssub.s32 16, 16
          %158 = vsyncadd [#allocation9], %s157
          %s160 = sshll.u32 %s2, 4
          %s161 = int_to_ptr.vmem [resolvable:$true] %s160
          %163 = dma.vmem_to_smem %s161, 16, [#allocation8], [#allocation9]
        $region20: #{tpu_custom_call.1} parent=11 // pred_fallthru
          _
      $region12: #{tpu_custom_call.1} parent=5 // pred_fallthru
        _
      %p164 = scmp.lt.s32.totalorder %s17, 4
      // Predicated region
      $region21: #{tpu_custom_call.1} parent=5 // pred_check
        %p165 = pneg %p164
      $region22: #{tpu_custom_call.1} parent=5 // pred_check_branch
        %167 = sbr.rel (%p165) target = $region24
      $region23: #{tpu_custom_call.1} parent=5 // pred_region
        // Predicated region
        $region25: #{tpu_custom_call.1} parent=23 // pred_check
          %p168 = pneg %p51
        $region26: #{tpu_custom_call.1} parent=23 // pred_check_branch
          %170 = sbr.rel (%p168) target = $region28
        $region27: #{tpu_custom_call.1} parent=23 // pred_region
          %s171 = sand.u32 %s41, 1
          %s172 = scalar_lea.sflag [#allocation4], %s171
          %s173 = sand.u32 %s41, 1
          %s174 = smul.addr %s173, 32
          %s175 = scalar_lea.vmem [#allocation3], %s174
          %s176 = smul.u32 2, %s25
          %s178 = ssub.s32 512, 512
          %179 = vsyncadd %s172, %s178
          %s180 = smul.addr %s176, 2
          %s181 = smul.addr %s24, 8
          %s182 = sadd.s32 %s180, %s181
          %s183 = smul.addr %s182, 128
          %s184 = scalar_lea.hbm %s0, %s183
          %s185 = sshll.u32 %s175, 4
          %s186 = int_to_ptr.vmem [resolvable:$true] %s185
          %191 = dma.hbm_to_vmem [thread:$0]  %s184, 512, %s186, %s172, 128, 128, 8
        $region28: #{tpu_custom_call.1} parent=23 // pred_fallthru
          _
      $region24: #{tpu_custom_call.1} parent=5 // pred_fallthru
        _
      %p192 = scmp.le.s32.totalorder 1, %s17
      %p193 = scmp.lt.s32.totalorder %s17, 5
      %p194 = pnand %p192, %p193
      %p195 = pneg %p194
      // Predicated region
      $region29: #{tpu_custom_call.1} parent=5 // pred_check
        _
      $region30: #{tpu_custom_call.1} parent=5 // pred_check_branch
        %197 = sbr.rel (%p194) target = $region32
      $region31: #{tpu_custom_call.1} parent=5 // pred_region
        %s198 = ssub.s32 %s17, 1
        %s199 = sand.u32 %s44, 1
        %s200 = scalar_lea.sflag [#allocation4], %s199
        %s201 = sand.u32 %s44, 1
        %s202 = smul.addr %s201, 32
        %s203 = scalar_lea.vmem [#allocation3], %s202
        // Predicated region
        $region33: #{tpu_custom_call.1} parent=31 // pred_check
          %p204 = pneg %p57
        $region34: #{tpu_custom_call.1} parent=31 // pred_check_branch
          %206 = sbr.rel (%p204) target = $region36
        $region35: #{tpu_custom_call.1} parent=31 // pred_region
          %207 = dma.done %s200, 512
        $region36: #{tpu_custom_call.1} parent=31 // pred_fallthru
          _
        // Predicated region
        $region37: #{tpu_custom_call.1} parent=31 // pred_check
          %p208 = pneg %p78
        $region38: #{tpu_custom_call.1} parent=31 // pred_check_branch
          %210 = sbr.rel (%p208) target = $region40
        $region39: #{tpu_custom_call.1} parent=31 // pred_region
          %211 = dma.done [#allocation6], 16
        $region40: #{tpu_custom_call.1} parent=31 // pred_fallthru
          _
        // Predicated region
        $region41: #{tpu_custom_call.1} parent=31 // pred_check
          %p212 = pneg %p99
        $region42: #{tpu_custom_call.1} parent=31 // pred_check_branch
          %214 = sbr.rel (%p212) target = $region44
        $region43: #{tpu_custom_call.1} parent=31 // pred_region
          %215 = dma.done [#allocation9], 16
        $region44: #{tpu_custom_call.1} parent=31 // pred_fallthru
          _
        %216 = sfence
        %s217 = sand.u32 %s44, 1
        %s218 = scalar_lea.sflag [#allocation4], %s217
        %s219 = sand.u32 %s44, 1
        %s220 = smul.addr %s219, 32
        %s221 = scalar_lea.vmem [#allocation3], %s220
        %p222 = pneg %p57
        %p223 = pneg %p54
        %p224 = pneg %p78
        %p225 = pneg %p75
        %p226 = pneg %p99
        %p227 = pneg %p96
        %p228 = pneg %p127
        %p229 = pneg %p124
        %s230 = sand.u32 %s114, 1
        %s231 = scalar_lea.sflag [#allocation5], %s230
        %s232 = sand.u32 %s114, 1
        %s233 = smul.addr %s232, 64
        %s234 = scalar_lea.vmem [#allocation10], %s233
        %s235 = smul.u32 2, %s27
        %s236 = smul.u32 4, %s27
        %vm237 = vcmask 146432
        %238 = vst.msk [vmem:[#allocation2] sm:$0xff] %vm237, 0.0
        %239 = vst.msk [vmem:[#allocation2 + $0x8] sm:$0xff] %vm237, 0.0
        %vm240 = vcmask 140288
        %241 = vst.msk [vmem:[#allocation2 + $0x10] sm:$0x3] %vm240, 0.0
        %v242 = vld [vmem:[%s203] sm:$0xff]
        %v243 = vld [vmem:[%s203 + $0x8] sm:$0xff]
        %246 = vrot.lane.b32.xlu0 %v242, 1
        %v247 = vpop.permute.xlu0 %246
        %248 = vrot.lane.b32.xlu0 %v243, 1
        %v249 = vpop.permute.xlu0 %248
        %vm252 = vcmask 138248
        %253 = vst.msk [vmem:[#allocation2 + $0x1] sm:$0xff] %vm252, %v247
        %254 = vst.msk [vmem:[#allocation2 + $0x9] sm:$0xff] %vm252, %v249
        %v255 = vld [vmem:[#allocation2] sm:$0xff]
        %v256 = vld [vmem:[#allocation2 + $0x8] sm:$0xff]
        %v257 = vld [vmem:[#allocation2 + $0x10] sm:$0x3]
        %s258 = smul.u32 %s27, 4
        %s259 = smul.u32 %s27, 36
        %s260 = sld [smem:[#allocation7 + %s259]]
        %v261 = vstv %s260
        %v262 = vmul.f32 %v255, %v261
        %v263 = vmul.f32 %v256, %v261
        %v264 = vadd.f32 %v262, 0.0
        %v265 = vadd.f32 %v263, 0.0
        %s266 = sadd.s32 %s259, 1
        %s267 = sld [smem:[#allocation7 + %s266]]
        %v268 = vstv %s267
        %v269 = vmul.f32 %v255, %v268
        %v270 = vmul.f32 %v256, %v268
        %273 = vrot.lane.b32.xlu0 %v269, 127
        %v274 = vpop.permute.xlu0 %273
        %275 = vrot.lane.b32.xlu0 %v270, 127
        %v276 = vpop.permute.xlu0 %275
        %v279 = vadd.f32 %v264, %v274
        %v280 = vadd.f32 %v265, %v276
        %s281 = sadd.s32 %s259, 2
        %s282 = sld [smem:[#allocation7 + %s281]]
        %v283 = vstv %s282
        %v284 = vmul.f32 %v255, %v283
        %v285 = vmul.f32 %v256, %v283
        %288 = vrot.lane.b32.xlu0 %v284, 126
        %v289 = vpop.permute.xlu0 %288
        %290 = vrot.lane.b32.xlu0 %v285, 126
        %v291 = vpop.permute.xlu0 %290
        %v294 = vadd.f32 %v279, %v289
        %v295 = vadd.f32 %v280, %v291
        %s296 = sadd.s32 %s259, 3
        %s297 = sld [smem:[#allocation7 + %s296]]
        %v298 = vstv %s297
        %v299 = vmul.f32 %v255, %v298
        %v300 = vmul.f32 %v256, %v298
        %v301 = vmul.f32 %v257, %v298
        %vm305 = vcmask 1046528
        %v306 = vrot.slane %v299, 1
        %v307 = vrot.slane %v300, 1
        %v308 = vsel %vm305, %v306, %v307
        %v309 = vrot.slane %v301, 1
        %v310 = vsel %vm305, %v307, %v309
        %v313 = vadd.f32 %v294, %v308
        %v314 = vadd.f32 %v295, %v310
        %s315 = sadd.s32 %s259, 4
        %s316 = sld [smem:[#allocation7 + %s315]]
        %v317 = vstv %s316
        %v318 = vmul.f32 %v255, %v317
        %v319 = vmul.f32 %v256, %v317
        %v320 = vmul.f32 %v257, %v317
        %v324 = vrot.slane %v318, 1
        %v325 = vrot.slane %v319, 1
        %v326 = vsel %vm305, %v324, %v325
        %v327 = vrot.slane %v320, 1
        %v328 = vsel %vm305, %v325, %v327
        %329 = vrot.lane.b32.xlu0 %v326, 127
        %v330 = vpop.permute.xlu0 %329
        %331 = vrot.lane.b32.xlu0 %v328, 127
        %v332 = vpop.permute.xlu0 %331
        %v335 = vadd.f32 %v313, %v330
        %v336 = vadd.f32 %v314, %v332
        %s337 = sadd.s32 %s259, 5
        %s338 = sld [smem:[#allocation7 + %s337]]
        %v339 = vstv %s338
        %v340 = vmul.f32 %v255, %v339
        %v341 = vmul.f32 %v256, %v339
        %v342 = vmul.f32 %v257, %v339
        %v346 = vrot.slane %v340, 1
        %v347 = vrot.slane %v341, 1
        %v348 = vsel %vm305, %v346, %v347
        %v349 = vrot.slane %v342, 1
        %v350 = vsel %vm305, %v347, %v349
        %351 = vrot.lane.b32.xlu0 %v348, 126
        %v352 = vpop.permute.xlu0 %351
        %353 = vrot.lane.b32.xlu0 %v350, 126
        %v354 = vpop.permute.xlu0 %353
        %v357 = vadd.f32 %v335, %v352
        %v358 = vadd.f32 %v336, %v354
        %s359 = sadd.s32 %s259, 6
        %s360 = sld [smem:[#allocation7 + %s359]]
        %v361 = vstv %s360
        %v362 = vmul.f32 %v255, %v361
        %v363 = vmul.f32 %v256, %v361
        %v364 = vmul.f32 %v257, %v361
        %vm368 = vcmask 1045504
        %v369 = vrot.slane %v362, 2
        %v370 = vrot.slane %v363, 2
        %v371 = vsel %vm368, %v369, %v370
        %v372 = vrot.slane %v364, 2
        %v373 = vsel %vm368, %v370, %v372
        %v376 = vadd.f32 %v357, %v371
        %v377 = vadd.f32 %v358, %v373
        %s378 = sadd.s32 %s259, 7
        %s379 = sld [smem:[#allocation7 + %s378]]
        %v380 = vstv %s379
        %v381 = vmul.f32 %v255, %v380
        %v382 = vmul.f32 %v256, %v380
        %v383 = vmul.f32 %v257, %v380
        %v387 = vrot.slane %v381, 2
        %v388 = vrot.slane %v382, 2
        %v389 = vsel %vm368, %v387, %v388
        %v390 = vrot.slane %v383, 2
        %v391 = vsel %vm368, %v388, %v390
        %392 = vrot.lane.b32.xlu0 %v389, 127
        %v393 = vpop.permute.xlu0 %392
        %394 = vrot.lane.b32.xlu0 %v391, 127
        %v395 = vpop.permute.xlu0 %394
        %v398 = vadd.f32 %v376, %v393
        %v399 = vadd.f32 %v377, %v395
        %s400 = sadd.s32 %s259, 8
        %s401 = sld [smem:[#allocation7 + %s400]]
        %v402 = vstv %s401
        %v403 = vmul.f32 %v255, %v402
        %v404 = vmul.f32 %v256, %v402
        %v405 = vmul.f32 %v257, %v402
        %v409 = vrot.slane %v403, 2
        %v410 = vrot.slane %v404, 2
        %v411 = vsel %vm368, %v409, %v410
        %v412 = vrot.slane %v405, 2
        %v413 = vsel %vm368, %v410, %v412
        %414 = vrot.lane.b32.xlu0 %v411, 126
        %v415 = vpop.permute.xlu0 %414
        %416 = vrot.lane.b32.xlu0 %v413, 126
        %v417 = vpop.permute.xlu0 %416
        %v420 = vadd.f32 %v398, %v415
        %v421 = vadd.f32 %v399, %v417
        %s422 = sld [smem:[#allocation8 + %s258]]
        %v423 = vstv %s422
        %v424 = vadd.f32 %v420, %v423
        %v425 = vadd.f32 %v421, %v423
        %v426 = vmul.f32 %v424, 0.01
        %v427 = vmul.f32 %v425, 0.01
        %v428 = vmax.f32 %v424, %v426
        %v429 = vmax.f32 %v425, %v427
        %vm430 = vcmask 130048
        %431 = vst.msk [vmem:[%s234] sm:$0xff] %vm430, %v428
        %432 = vst.msk [vmem:[%s234 + $0x8] sm:$0xff] %vm430, %v429
        %s433 = sadd.s32 %s258, 1
        %s434 = smul.u32 %s433, 9
        %s435 = sld [smem:[#allocation7 + %s434]]
        %v436 = vstv %s435
        %v437 = vmul.f32 %v255, %v436
        %v438 = vmul.f32 %v256, %v436
        %v439 = vadd.f32 %v437, 0.0
        %v440 = vadd.f32 %v438, 0.0
        %s441 = sadd.s32 %s434, 1
        %s442 = sld [smem:[#allocation7 + %s441]]
        %v443 = vstv %s442
        %v444 = vmul.f32 %v255, %v443
        %v445 = vmul.f32 %v256, %v443
        %448 = vrot.lane.b32.xlu0 %v444, 127
        %v449 = vpop.permute.xlu0 %448
        %450 = vrot.lane.b32.xlu0 %v445, 127
        %v451 = vpop.permute.xlu0 %450
        %v454 = vadd.f32 %v439, %v449
        %v455 = vadd.f32 %v440, %v451
        %s456 = sadd.s32 %s434, 2
        %s457 = sld [smem:[#allocation7 + %s456]]
        %v458 = vstv %s457
        %v459 = vmul.f32 %v255, %v458
        %v460 = vmul.f32 %v256, %v458
        %463 = vrot.lane.b32.xlu0 %v459, 126
        %v464 = vpop.permute.xlu0 %463
        %465 = vrot.lane.b32.xlu0 %v460, 126
        %v466 = vpop.permute.xlu0 %465
        %v469 = vadd.f32 %v454, %v464
        %v470 = vadd.f32 %v455, %v466
        %s471 = sadd.s32 %s434, 3
        %s472 = sld [smem:[#allocation7 + %s471]]
        %v473 = vstv %s472
        %v474 = vmul.f32 %v255, %v473
        %v475 = vmul.f32 %v256, %v473
        %v476 = vmul.f32 %v257, %v473
        %v480 = vrot.slane %v474, 1
        %v481 = vrot.slane %v475, 1
        %v482 = vsel %vm305, %v480, %v481
        %v483 = vrot.slane %v476, 1
        %v484 = vsel %vm305, %v481, %v483
        %v487 = vadd.f32 %v469, %v482
        %v488 = vadd.f32 %v470, %v484
        %s489 = sadd.s32 %s434, 4
        %s490 = sld [smem:[#allocation7 + %s489]]
        %v491 = vstv %s490
        %v492 = vmul.f32 %v255, %v491
        %v493 = vmul.f32 %v256, %v491
        %v494 = vmul.f32 %v257, %v491
        %v498 = vrot.slane %v492, 1
        %v499 = vrot.slane %v493, 1
        %v500 = vsel %vm305, %v498, %v499
        %v501 = vrot.slane %v494, 1
        %v502 = vsel %vm305, %v499, %v501
        %503 = vrot.lane.b32.xlu0 %v500, 127
        %v504 = vpop.permute.xlu0 %503
        %505 = vrot.lane.b32.xlu0 %v502, 127
        %v506 = vpop.permute.xlu0 %505
        %v509 = vadd.f32 %v487, %v504
        %v510 = vadd.f32 %v488, %v506
        %s511 = sadd.s32 %s434, 5
        %s512 = sld [smem:[#allocation7 + %s511]]
        %v513 = vstv %s512
        %v514 = vmul.f32 %v255, %v513
        %v515 = vmul.f32 %v256, %v513
        %v516 = vmul.f32 %v257, %v513
        %v520 = vrot.slane %v514, 1
        %v521 = vrot.slane %v515, 1
        %v522 = vsel %vm305, %v520, %v521
        %v523 = vrot.slane %v516, 1
        %v524 = vsel %vm305, %v521, %v523
        %525 = vrot.lane.b32.xlu0 %v522, 126
        %v526 = vpop.permute.xlu0 %525
        %527 = vrot.lane.b32.xlu0 %v524, 126
        %v528 = vpop.permute.xlu0 %527
        %v531 = vadd.f32 %v509, %v526
        %v532 = vadd.f32 %v510, %v528
        %s533 = sadd.s32 %s434, 6
        %s534 = sld [smem:[#allocation7 + %s533]]
        %v535 = vstv %s534
        %v536 = vmul.f32 %v255, %v535
        %v537 = vmul.f32 %v256, %v535
        %v538 = vmul.f32 %v257, %v535
        %v542 = vrot.slane %v536, 2
        %v543 = vrot.slane %v537, 2
        %v544 = vsel %vm368, %v542, %v543
        %v545 = vrot.slane %v538, 2
        %v546 = vsel %vm368, %v543, %v545
        %v549 = vadd.f32 %v531, %v544
        %v550 = vadd.f32 %v532, %v546
        %s551 = sadd.s32 %s434, 7
        %s552 = sld [smem:[#allocation7 + %s551]]
        %v553 = vstv %s552
        %v554 = vmul.f32 %v255, %v553
        %v555 = vmul.f32 %v256, %v553
        %v556 = vmul.f32 %v257, %v553
        %v560 = vrot.slane %v554, 2
        %v561 = vrot.slane %v555, 2
        %v562 = vsel %vm368, %v560, %v561
        %v563 = vrot.slane %v556, 2
        %v564 = vsel %vm368, %v561, %v563
        %565 = vrot.lane.b32.xlu0 %v562, 127
        %v566 = vpop.permute.xlu0 %565
        %567 = vrot.lane.b32.xlu0 %v564, 127
        %v568 = vpop.permute.xlu0 %567
        %v571 = vadd.f32 %v549, %v566
        %v572 = vadd.f32 %v550, %v568
        %s573 = sadd.s32 %s434, 8
        %s574 = sld [smem:[#allocation7 + %s573]]
        %v575 = vstv %s574
        %v576 = vmul.f32 %v255, %v575
        %v577 = vmul.f32 %v256, %v575
        %v578 = vmul.f32 %v257, %v575
        %v582 = vrot.slane %v576, 2
        %v583 = vrot.slane %v577, 2
        %v584 = vsel %vm368, %v582, %v583
        %v585 = vrot.slane %v578, 2
        %v586 = vsel %vm368, %v583, %v585
        %587 = vrot.lane.b32.xlu0 %v584, 126
        %v588 = vpop.permute.xlu0 %587
        %589 = vrot.lane.b32.xlu0 %v586, 126
        %v590 = vpop.permute.xlu0 %589
        %v593 = vadd.f32 %v571, %v588
        %v594 = vadd.f32 %v572, %v590
        %s595 = sld [smem:[#allocation8 + %s433]]
        %v596 = vstv %s595
        %v597 = vadd.f32 %v593, %v596
        %v598 = vadd.f32 %v594, %v596
        %v599 = vmul.f32 %v597, 0.01
        %v600 = vmul.f32 %v598, 0.01
        %v601 = vmax.f32 %v597, %v599
        %v602 = vmax.f32 %v598, %v600
        %s603 = scalar_lea.vmem %s234, 16 [#allocation10]
        %604 = vst.msk [vmem:[%s603] sm:$0xff] %vm430, %v601
        %605 = vst.msk [vmem:[%s603 + $0x8] sm:$0xff] %vm430, %v602
        %s606 = smul.u32 %s27, 2
        %s607 = sadd.s32 %s606, 1
        %s608 = scalar_lea.vmem %s203, 16 [#allocation3]
        %v609 = vld [vmem:[%s608] sm:$0xff]
        %v610 = vld [vmem:[%s608 + $0x8] sm:$0xff]
        %613 = vrot.lane.b32.xlu0 %v609, 1
        %v614 = vpop.permute.xlu0 %613
        %615 = vrot.lane.b32.xlu0 %v610, 1
        %v616 = vpop.permute.xlu0 %615
        %619 = vst.msk [vmem:[#allocation2 + $0x1] sm:$0xff] %vm252, %v614
        %620 = vst.msk [vmem:[#allocation2 + $0x9] sm:$0xff] %vm252, %v616
        %v621 = vld [vmem:[#allocation2] sm:$0xff]
        %v622 = vld [vmem:[#allocation2 + $0x8] sm:$0xff]
        %v623 = vld [vmem:[#allocation2 + $0x10] sm:$0x3]
        %s624 = smul.u32 %s607, 2
        %s625 = smul.u32 %s607, 18
        %s626 = sld [smem:[#allocation7 + %s625]]
        %v627 = vstv %s626
        %v628 = vmul.f32 %v621, %v627
        %v629 = vmul.f32 %v622, %v627
        %v630 = vadd.f32 %v628, 0.0
        %v631 = vadd.f32 %v629, 0.0
        %s632 = sadd.s32 %s625, 1
        %s633 = sld [smem:[#allocation7 + %s632]]
        %v634 = vstv %s633
        %v635 = vmul.f32 %v621, %v634
        %v636 = vmul.f32 %v622, %v634
        %639 = vrot.lane.b32.xlu0 %v635, 127
        %v640 = vpop.permute.xlu0 %639
        %641 = vrot.lane.b32.xlu0 %v636, 127
        %v642 = vpop.permute.xlu0 %641
        %v645 = vadd.f32 %v630, %v640
        %v646 = vadd.f32 %v631, %v642
        %s647 = sadd.s32 %s625, 2
        %s648 = sld [smem:[#allocation7 + %s647]]
        %v649 = vstv %s648
        %v650 = vmul.f32 %v621, %v649
        %v651 = vmul.f32 %v622, %v649
        %654 = vrot.lane.b32.xlu0 %v650, 126
        %v655 = vpop.permute.xlu0 %654
        %656 = vrot.lane.b32.xlu0 %v651, 126
        %v657 = vpop.permute.xlu0 %656
        %v660 = vadd.f32 %v645, %v655
        %v661 = vadd.f32 %v646, %v657
        %s662 = sadd.s32 %s625, 3
        %s663 = sld [smem:[#allocation7 + %s662]]
        %v664 = vstv %s663
        %v665 = vmul.f32 %v621, %v664
        %v666 = vmul.f32 %v622, %v664
        %v667 = vmul.f32 %v623, %v664
        %v671 = vrot.slane %v665, 1
        %v672 = vrot.slane %v666, 1
        %v673 = vsel %vm305, %v671, %v672
        %v674 = vrot.slane %v667, 1
        %v675 = vsel %vm305, %v672, %v674
        %v678 = vadd.f32 %v660, %v673
        %v679 = vadd.f32 %v661, %v675
        %s680 = sadd.s32 %s625, 4
        %s681 = sld [smem:[#allocation7 + %s680]]
        %v682 = vstv %s681
        %v683 = vmul.f32 %v621, %v682
        %v684 = vmul.f32 %v622, %v682
        %v685 = vmul.f32 %v623, %v682
        %v689 = vrot.slane %v683, 1
        %v690 = vrot.slane %v684, 1
        %v691 = vsel %vm305, %v689, %v690
        %v692 = vrot.slane %v685, 1
        %v693 = vsel %vm305, %v690, %v692
        %694 = vrot.lane.b32.xlu0 %v691, 127
        %v695 = vpop.permute.xlu0 %694
        %696 = vrot.lane.b32.xlu0 %v693, 127
        %v697 = vpop.permute.xlu0 %696
        %v700 = vadd.f32 %v678, %v695
        %v701 = vadd.f32 %v679, %v697
        %s702 = sadd.s32 %s625, 5
        %s703 = sld [smem:[#allocation7 + %s702]]
        %v704 = vstv %s703
        %v705 = vmul.f32 %v621, %v704
        %v706 = vmul.f32 %v622, %v704
        %v707 = vmul.f32 %v623, %v704
        %v711 = vrot.slane %v705, 1
        %v712 = vrot.slane %v706, 1
        %v713 = vsel %vm305, %v711, %v712
        %v714 = vrot.slane %v707, 1
        %v715 = vsel %vm305, %v712, %v714
        %716 = vrot.lane.b32.xlu0 %v713, 126
        %v717 = vpop.permute.xlu0 %716
        %718 = vrot.lane.b32.xlu0 %v715, 126
        %v719 = vpop.permute.xlu0 %718
        %v722 = vadd.f32 %v700, %v717
        %v723 = vadd.f32 %v701, %v719
        %s724 = sadd.s32 %s625, 6
        %s725 = sld [smem:[#allocation7 + %s724]]
        %v726 = vstv %s725
        %v727 = vmul.f32 %v621, %v726
        %v728 = vmul.f32 %v622, %v726
        %v729 = vmul.f32 %v623, %v726
        %v733 = vrot.slane %v727, 2
        %v734 = vrot.slane %v728, 2
        %v735 = vsel %vm368, %v733, %v734
        %v736 = vrot.slane %v729, 2
        %v737 = vsel %vm368, %v734, %v736
        %v740 = vadd.f32 %v722, %v735
        %v741 = vadd.f32 %v723, %v737
        %s742 = sadd.s32 %s625, 7
        %s743 = sld [smem:[#allocation7 + %s742]]
        %v744 = vstv %s743
        %v745 = vmul.f32 %v621, %v744
        %v746 = vmul.f32 %v622, %v744
        %v747 = vmul.f32 %v623, %v744
        %v751 = vrot.slane %v745, 2
        %v752 = vrot.slane %v746, 2
        %v753 = vsel %vm368, %v751, %v752
        %v754 = vrot.slane %v747, 2
        %v755 = vsel %vm368, %v752, %v754
        %756 = vrot.lane.b32.xlu0 %v753, 127
        %v757 = vpop.permute.xlu0 %756
        %758 = vrot.lane.b32.xlu0 %v755, 127
        %v759 = vpop.permute.xlu0 %758
        %v762 = vadd.f32 %v740, %v757
        %v763 = vadd.f32 %v741, %v759
        %s764 = sadd.s32 %s625, 8
        %s765 = sld [smem:[#allocation7 + %s764]]
        %v766 = vstv %s765
        %v767 = vmul.f32 %v621, %v766
        %v768 = vmul.f32 %v622, %v766
        %v769 = vmul.f32 %v623, %v766
        %v773 = vrot.slane %v767, 2
        %v774 = vrot.slane %v768, 2
        %v775 = vsel %vm368, %v773, %v774
        %v776 = vrot.slane %v769, 2
        %v777 = vsel %vm368, %v774, %v776
        %778 = vrot.lane.b32.xlu0 %v775, 126
        %v779 = vpop.permute.xlu0 %778
        %780 = vrot.lane.b32.xlu0 %v777, 126
        %v781 = vpop.permute.xlu0 %780
        %v784 = vadd.f32 %v762, %v779
        %v785 = vadd.f32 %v763, %v781
        %s786 = sld [smem:[#allocation8 + %s624]]
        %v787 = vstv %s786
        %v788 = vadd.f32 %v784, %v787
        %v789 = vadd.f32 %v785, %v787
        %v790 = vmul.f32 %v788, 0.01
        %v791 = vmul.f32 %v789, 0.01
        %v792 = vmax.f32 %v788, %v790
        %v793 = vmax.f32 %v789, %v791
        %s794 = scalar_lea.vmem %s234, 32 [#allocation10]
        %795 = vst.msk [vmem:[%s794] sm:$0xff] %vm430, %v792
        %796 = vst.msk [vmem:[%s794 + $0x8] sm:$0xff] %vm430, %v793
        %s797 = sadd.s32 %s624, 1
        %s798 = smul.u32 %s797, 9
        %s799 = sld [smem:[#allocation7 + %s798]]
        %v800 = vstv %s799
        %v801 = vmul.f32 %v621, %v800
        %v802 = vmul.f32 %v622, %v800
        %v803 = vadd.f32 %v801, 0.0
        %v804 = vadd.f32 %v802, 0.0
        %s805 = sadd.s32 %s798, 1
        %s806 = sld [smem:[#allocation7 + %s805]]
        %v807 = vstv %s806
        %v808 = vmul.f32 %v621, %v807
        %v809 = vmul.f32 %v622, %v807
        %812 = vrot.lane.b32.xlu0 %v808, 127
        %v813 = vpop.permute.xlu0 %812
        %814 = vrot.lane.b32.xlu0 %v809, 127
        %v815 = vpop.permute.xlu0 %814
        %v818 = vadd.f32 %v803, %v813
        %v819 = vadd.f32 %v804, %v815
        %s820 = sadd.s32 %s798, 2
        %s821 = sld [smem:[#allocation7 + %s820]]
        %v822 = vstv %s821
        %v823 = vmul.f32 %v621, %v822
        %v824 = vmul.f32 %v622, %v822
        %827 = vrot.lane.b32.xlu0 %v823, 126
        %v828 = vpop.permute.xlu0 %827
        %829 = vrot.lane.b32.xlu0 %v824, 126
        %v830 = vpop.permute.xlu0 %829
        %v833 = vadd.f32 %v818, %v828
        %v834 = vadd.f32 %v819, %v830
        %s835 = sadd.s32 %s798, 3
        %s836 = sld [smem:[#allocation7 + %s835]]
        %v837 = vstv %s836
        %v838 = vmul.f32 %v621, %v837
        %v839 = vmul.f32 %v622, %v837
        %v840 = vmul.f32 %v623, %v837
        %v844 = vrot.slane %v838, 1
        %v845 = vrot.slane %v839, 1
        %v846 = vsel %vm305, %v844, %v845
        %v847 = vrot.slane %v840, 1
        %v848 = vsel %vm305, %v845, %v847
        %v851 = vadd.f32 %v833, %v846
        %v852 = vadd.f32 %v834, %v848
        %s853 = sadd.s32 %s798, 4
        %s854 = sld [smem:[#allocation7 + %s853]]
        %v855 = vstv %s854
        %v856 = vmul.f32 %v621, %v855
        %v857 = vmul.f32 %v622, %v855
        %v858 = vmul.f32 %v623, %v855
        %v862 = vrot.slane %v856, 1
        %v863 = vrot.slane %v857, 1
        %v864 = vsel %vm305, %v862, %v863
        %v865 = vrot.slane %v858, 1
        %v866 = vsel %vm305, %v863, %v865
        %867 = vrot.lane.b32.xlu0 %v864, 127
        %v868 = vpop.permute.xlu0 %867
        %869 = vrot.lane.b32.xlu0 %v866, 127
        %v870 = vpop.permute.xlu0 %869
        %v873 = vadd.f32 %v851, %v868
        %v874 = vadd.f32 %v852, %v870
        %s875 = sadd.s32 %s798, 5
        %s876 = sld [smem:[#allocation7 + %s875]]
        %v877 = vstv %s876
        %v878 = vmul.f32 %v621, %v877
        %v879 = vmul.f32 %v622, %v877
        %v880 = vmul.f32 %v623, %v877
        %v884 = vrot.slane %v878, 1
        %v885 = vrot.slane %v879, 1
        %v886 = vsel %vm305, %v884, %v885
        %v887 = vrot.slane %v880, 1
        %v888 = vsel %vm305, %v885, %v887
        %889 = vrot.lane.b32.xlu0 %v886, 126
        %v890 = vpop.permute.xlu0 %889
        %891 = vrot.lane.b32.xlu0 %v888, 126
        %v892 = vpop.permute.xlu0 %891
        %v895 = vadd.f32 %v873, %v890
        %v896 = vadd.f32 %v874, %v892
        %s897 = sadd.s32 %s798, 6
        %s898 = sld [smem:[#allocation7 + %s897]]
        %v899 = vstv %s898
        %v900 = vmul.f32 %v621, %v899
        %v901 = vmul.f32 %v622, %v899
        %v902 = vmul.f32 %v623, %v899
        %v906 = vrot.slane %v900, 2
        %v907 = vrot.slane %v901, 2
        %v908 = vsel %vm368, %v906, %v907
        %v909 = vrot.slane %v902, 2
        %v910 = vsel %vm368, %v907, %v909
        %v913 = vadd.f32 %v895, %v908
        %v914 = vadd.f32 %v896, %v910
        %s915 = sadd.s32 %s798, 7
        %s916 = sld [smem:[#allocation7 + %s915]]
        %v917 = vstv %s916
        %v918 = vmul.f32 %v621, %v917
        %v919 = vmul.f32 %v622, %v917
        %v920 = vmul.f32 %v623, %v917
        %v924 = vrot.slane %v918, 2
        %v925 = vrot.slane %v919, 2
        %v926 = vsel %vm368, %v924, %v925
        %v927 = vrot.slane %v920, 2
        %v928 = vsel %vm368, %v925, %v927
        %929 = vrot.lane.b32.xlu0 %v926, 127
        %v930 = vpop.permute.xlu0 %929
        %931 = vrot.lane.b32.xlu0 %v928, 127
        %v932 = vpop.permute.xlu0 %931
        %v935 = vadd.f32 %v913, %v930
        %v936 = vadd.f32 %v914, %v932
        %s937 = sadd.s32 %s798, 8
        %s938 = sld [smem:[#allocation7 + %s937]]
        %v939 = vstv %s938
        %v940 = vmul.f32 %v621, %v939
        %v941 = vmul.f32 %v622, %v939
        %v942 = vmul.f32 %v623, %v939
        %v946 = vrot.slane %v940, 2
        %v947 = vrot.slane %v941, 2
        %v948 = vsel %vm368, %v946, %v947
        %v949 = vrot.slane %v942, 2
        %v950 = vsel %vm368, %v947, %v949
        %951 = vrot.lane.b32.xlu0 %v948, 126
        %v952 = vpop.permute.xlu0 %951
        %953 = vrot.lane.b32.xlu0 %v950, 126
        %v954 = vpop.permute.xlu0 %953
        %v957 = vadd.f32 %v935, %v952
        %v958 = vadd.f32 %v936, %v954
        %s959 = sld [smem:[#allocation8 + %s797]]
        %v960 = vstv %s959
        %v961 = vadd.f32 %v957, %v960
        %v962 = vadd.f32 %v958, %v960
        %v963 = vmul.f32 %v961, 0.01
        %v964 = vmul.f32 %v962, 0.01
        %v965 = vmax.f32 %v961, %v963
        %v966 = vmax.f32 %v962, %v964
        %s967 = scalar_lea.vmem %s234, 48 [#allocation10]
        %968 = vst.msk [vmem:[%s967] sm:$0xff] %vm430, %v965
        %969 = vst.msk [vmem:[%s967 + $0x8] sm:$0xff] %vm430, %v966
        %s970 = sand.u32 %s114, 1
        %s971 = scalar_lea.sflag [#allocation5], %s970
        %s972 = sand.u32 %s114, 1
        %s973 = smul.addr %s972, 64
        %s974 = scalar_lea.vmem [#allocation10], %s973
        // Predicated region
        $region45: #{tpu_custom_call.1} parent=31 // pred_check
          %p975 = pneg %p124
        $region46: #{tpu_custom_call.1} parent=31 // pred_check_branch
          %977 = sbr.rel (%p975) target = $region48
        $region47: #{tpu_custom_call.1} parent=31 // pred_region
          %s978 = smul.u32 4, %s27
          %s980 = ssub.s32 1024, 1024
          %981 = vsyncadd %s971, %s980
          %s982 = smul.addr %s978, 2
          %s983 = smul.addr %s26, 16
          %s984 = sadd.s32 %s982, %s983
          %s985 = smul.addr %s984, 128
          %s986 = scalar_lea.hbm %s3, %s985
          %s987 = sshll.u32 %s974, 4
          %s988 = int_to_ptr.vmem [resolvable:$true] %s987
          %993 = dma.vmem_to_hbm [thread:$0]  %s988, 1024, %s986, %s971, 128, 128, 8
        $region48: #{tpu_custom_call.1} parent=31 // pred_fallthru
          _
      $region32: #{tpu_custom_call.1} parent=5 // pred_fallthru
        _
      %p994 = scmp.le.s32.totalorder 2, %s17
      // Predicated region
      $region49: #{tpu_custom_call.1} parent=5 // pred_check
        %p995 = pneg %p994
      $region50: #{tpu_custom_call.1} parent=5 // pred_check_branch
        %997 = sbr.rel (%p995) target = $region52
      $region51: #{tpu_custom_call.1} parent=5 // pred_region
        %s998 = ssub.s32 %s17, 2
        // Predicated region
        $region53: #{tpu_custom_call.1} parent=51 // pred_check
          %p999 = pneg %p130
        $region54: #{tpu_custom_call.1} parent=51 // pred_check_branch
          %1001 = sbr.rel (%p999) target = $region56
        $region55: #{tpu_custom_call.1} parent=51 // pred_region
          %s1002 = sand.u32 %s115, 1
          %s1003 = scalar_lea.sflag [#allocation5], %s1002
          %s1004 = sand.u32 %s115, 1
          %s1005 = smul.addr %s1004, 64
          %s1006 = scalar_lea.vmem [#allocation10], %s1005
          %1007 = dma.done %s1003, 1024
        $region56: #{tpu_custom_call.1} parent=51 // pred_fallthru
          _
      $region52: #{tpu_custom_call.1} parent=5 // pred_fallthru
        _
    $region6: #{tpu_custom_call.1} parent=1 // loop_footer
      %s21 = sadd.s32 1, %s17
    $region7: #{tpu_custom_call.1} parent=1 // loop_footer_branch
      %16 = sbr.rel target = $region3
    $region8: #{tpu_custom_call.1} parent=1 // loop_exit
      _
    %1008 = vsyncpa [#allocation4], 1
    %s1009 = scalar_lea.sflag [#allocation4], 1
    %1010 = vsyncpa %s1009, 1
    %1011 = vsyncpa [#allocation5], 1
    %s1012 = scalar_lea.sflag [#allocation5], 1
    %1013 = vsyncpa %s1012, 1
    %1014 = vsyncpa [#allocation6], 1
    %s1015 = scalar_lea.sflag [#allocation6], 1
    %1016 = vsyncpa %s1015, 1
    %1017 = vsyncpa [#allocation9], 1

</llo_original>
